<compile_context>
chip_gen: v7x
topology: tpu7x:2x2x1
jax: 0.10.0
libtpu: 0.0.40
codegen_flags: <defaults>
</compile_context>

<pallas_src>
import functools
import math

import numpy as np
import jax
import jax.numpy as jnp
from jax import lax
from jax.experimental import pallas as pl
from jax.experimental.pallas import tpu as pltpu


# ---------------------------------------------------------------------------
# wrapper-side layout helpers (pure indexing / data movement, no conv FLOPs)
# ---------------------------------------------------------------------------
def _conv_out(size, k, stride, pad):
    return (size + 2 * pad - k) // stride + 1


def _conv1_patch_map(x_nchw, k, stride, pad):
    """(B,C,H,W) -> (B,OH1,OW1,kk*C): conv1 im2col patch at every conv1 output
    position; column order (t1, c)."""
    B, C, H, W = x_nchw.shape
    OH = _conv_out(H, k, stride, pad)
    OW = _conv_out(W, k, stride, pad)
    xp = jnp.pad(jnp.transpose(x_nchw, (0, 2, 3, 1)),
                 ((0, 0), (pad, pad), (pad, pad), (0, 0)))
    taps = []
    for ky in range(k):
        for kx in range(k):
            taps.append(xp[:, ky:ky + stride * (OH - 1) + 1:stride,
                            kx:kx + stride * (OW - 1) + 1:stride, :])   # (B,OH,OW,C)
    pm = jnp.stack(taps, axis=3)                                        # (B,OH,OW,kk,C)
    return pm.reshape(B, OH, OW, k * k * C), OH, OW


def _nested_patches(pm, oh1, ow1, k, stride, pad):
    """Gather the conv1 patch map per conv2 output position and conv2 tap.

    Returns:
      nested: (B*S2, kk2*kk1*Cin), row order (b, s2), col order (t2, t1, c).
      valid:  (S2, kk2) float 0/1 mask — 1 where the conv2 tap hits a real
              (in-bounds) conv1 output position, 0 where it hits conv2 padding.
    """
    B, _, _, F = pm.shape
    oh2 = _conv_out(oh1, k, stride, pad)
    ow2 = _conv_out(ow1, k, stride, pad)
    pmp = jnp.pad(pm, ((0, 0), (pad, pad), (pad, pad), (0, 0)))   # zero patches at pad
    taps = []
    valid = np.zeros((oh2 * ow2, k * k), np.float32)
    for ky in range(k):
        for kx in range(k):
            taps.append(pmp[:, ky:ky + stride * (oh2 - 1) + 1:stride,
                             kx:kx + stride * (ow2 - 1) + 1:stride, :])  # (B,OH2,OW2,F)
            t2 = ky * k + kx
            for oh in range(oh2):
                ih = stride * oh + ky - pad
                for ow in range(ow2):
                    iw = stride * ow + kx - pad
                    if 0 <= ih < oh1 and 0 <= iw < ow1:
                        valid[oh * ow2 + ow, t2] = 1.0
    nested = jnp.stack(taps, axis=3)                              # (B,OH2,OW2,kk2,F)
    nested = nested.reshape(B * oh2 * ow2, k * k * F)
    return nested, valid, oh2, ow2


# ---------------------------------------------------------------------------
# fused Pallas kernel: three matmuls per batch tile
# ---------------------------------------------------------------------------
def _flattener_kernel(p_ref, w1_ref, bm1_ref, w2_ref, b2_ref, w3_ref, b3_ref,
                      out_ref, flat_ref, *, tb, s2, c2):
    kk_c1 = bm1_ref.shape[1]

    # conv1 (+ conv2 tap concatenation) : ONE block-diagonal im2col matmul.
    #   (tb*s2, kk2*kk1*Cin) @ (kk2*kk1*Cin, kk2*C1) -> (tb*s2, kk2*C1)
    h1 = jnp.dot(p_ref[...], w1_ref[...], preferred_element_type=jnp.float32)
    # masked bias: out-of-bounds conv2 taps have a zero patch AND a zero bias,
    # so relu yields exactly 0 (== conv2 zero padding).  Leading-dim reshapes
    # only (last dim unchanged) -> no lane relayout.
    h1 = h1.reshape(tb, s2, kk_c1)
    h1 = jnp.maximum(h1 + bm1_ref[...][None, :, :], 0.0)
    h1 = h1.reshape(tb * s2, kk_c1)

    # conv2 : ONE im2col matmul, K = kk2*C1 = 72.
    h2 = jnp.dot(h1, w2_ref[...], preferred_element_type=jnp.float32) + b2_ref[...]
    h2 = jnp.maximum(h2, 0.0)                                   # (tb*s2, c2)

    # flatten: (tb*s2, c2) -> (tb, s2*c2) via a small VMEM scratch
    # (static lane-offset stores; avoids an unsupported lane-mixing reshape).
    h2_3d = h2.reshape(tb, s2, c2)
    for s in range(s2):
        flat_ref[:, s * c2:(s + 1) * c2] = h2_3d[:, s, :]

    # flatten + Linear + tanh : ONE lane-dense matmul, K = s2*c2, N = rnn_pad.
    pre = jnp.dot(flat_ref[...], w3_ref[...], preferred_element_type=jnp.float32)
    out_ref[...] = jnp.tanh(pre + b3_ref[...]).astype(out_ref.dtype)


def flattener_forward(z_t, params, *, kernel_size, stride=2, batch_tile=None):
    """Pallas implementation of Flattener.forward. z_t: (B, C_in, H, W) float32."""
    B, Cin, H, W = z_t.shape
    k = kernel_size
    pad = (k - 1) // 2
    kk = k * k

    w_c1, b_c1 = params["w_conv1"], params["b_conv1"]   # (C1,Cin,k,k), (C1,)
    w_c2, b_c2 = params["w_conv2"], params["b_conv2"]   # (C2,C1 ,k,k), (C2,)
    w_l, b_l = params["w_lin"], params["b_lin"]         # (RNN, C2*OH2*OW2), (RNN,)
    C1, C2, RNN = w_c1.shape[0], w_c2.shape[0], w_l.shape[0]

    # ---- nested im2col: conv1 patches pre-gathered per conv2 tap (indexing only)
    pm, OH1, OW1 = _conv1_patch_map(z_t, k, stride, pad)          # (B,OH1,OW1,kk*Cin)
    patches, valid, OH2, OW2 = _nested_patches(pm, OH1, OW1, k, stride, pad)
    S2 = OH2 * OW2
    KKF = kk * kk * Cin            # 324 for k=3, Cin=4
    KC1 = kk * C1                  # 72  for k=3, C1=8

    # ---- batch tile (>=2 parallel grid steps helps v7x; use batch_tile=B on v5e/v6e)
    if batch_tile is None:
        half = B // 2
        batch_tile = half if (B % 2 == 0 and half > 0 and (half * S2) % 8 == 0
                              and half % 8 == 0) else B
    TB = batch_tile
    assert B % TB == 0, "batch must be divisible by the batch tile"
    assert TB == B or ((TB * S2) % 8 == 0 and TB % 8 == 0), "tile must respect (8,128) tiling"
    nb = B // TB

    # ---- repack weights into matmul form
    w1m = jnp.transpose(w_c1, (2, 3, 1, 0)).reshape(kk * Cin, C1)          # (36, C1)
    w1blk = jnp.kron(jnp.eye(kk, dtype=jnp.float32), w1m)                  # (324, kk*C1)
    bm1 = (jnp.asarray(valid)[:, :, None] * b_c1[None, None, :]).reshape(S2, KC1)
    w2r = jnp.transpose(w_c2, (2, 3, 1, 0)).reshape(KC1, C2)               # (72, C2)
    b2m = b_c2.reshape(1, C2)
    # torch .view flattens channel-major (c, s); reorder Linear weight to (s, c)
    w3r = jnp.transpose(w_l.reshape(RNN, C2, S2), (2, 1, 0)).reshape(S2 * C2, RNN)
    b3m = b_l.reshape(1, RNN)

    # lane-dense output: pad rnn dim up to a multiple of 128, slice afterwards
    rnn_pad = ((RNN + 127) // 128) * 128
    if rnn_pad != RNN:
        w3r = jnp.pad(w3r, ((0, 0), (0, rnn_pad - RNN)))
        b3m = jnp.pad(b3m, ((0, 0), (0, rnn_pad - RNN)))

    kernel = functools.partial(_flattener_kernel, tb=TB, s2=S2, c2=C2)

    def const(shape):
        return pl.BlockSpec(shape, lambda i, _r=len(shape): (0,) * _r)

    # honest MXU/byte accounting (includes the block-diagonal zero lanes)
    flops = 2 * B * S2 * (KKF * KC1 + KC1 * C2) + 2 * B * (S2 * C2) * rnn_pad
    bytes_accessed = 4 * (B * S2 * KKF + KKF * KC1 + S2 * KC1 + KC1 * C2 + C2
                          + S2 * C2 * rnn_pad + rnn_pad + B * rnn_pad)
    cost = pl.CostEstimate(flops=int(flops), transcendentals=int(B * rnn_pad),
                           bytes_accessed=int(bytes_accessed))

    out = pl.pallas_call(
        kernel,
        out_shape=jax.ShapeDtypeStruct((B, rnn_pad), jnp.float32),
        grid=(nb,),
        in_specs=[
            pl.BlockSpec((TB * S2, KKF), lambda i: (i, 0)),   # nested patches (tiled)
            const((KKF, KC1)),                                # block-diag conv1 weight
            const((S2, KC1)),                                 # validity-masked conv1 bias
            const((KC1, C2)), const((1, C2)),                 # conv2 weight / bias
            const((S2 * C2, rnn_pad)), const((1, rnn_pad)),   # linear weight / bias
        ],
        out_specs=pl.BlockSpec((TB, rnn_pad), lambda i: (i, 0)),
        scratch_shapes=[pltpu.VMEM((TB, S2 * C2), jnp.float32)],
        compiler_params=pltpu.CompilerParams(dimension_semantics=("parallel",)),
        cost_estimate=cost,
    )(patches, w1blk, bm1, w2r, b2m, w3r, b3m)

    return out[:, :RNN]


# ---------------------------------------------------------------------------
# parameters (mimic nn.Conv2d / nn.Linear default init) and pure-JAX reference
# ---------------------------------------------------------------------------
def init_params(key, input_channels, flatten_channels, kernel_size, input_dim, rnn_dim):
    ks = jax.random.split(key, 6)

    def uni(k_, shape, fan_in):
        bound = 1.0 / math.sqrt(fan_in)
        return jax.random.uniform(k_, shape, jnp.float32, -bound, bound)

    c1, c2 = flatten_channels
    kk = kernel_size * kernel_size
    return {
        "w_conv1": uni(ks[0], (c1, input_channels, kernel_size, kernel_size), input_channels * kk),
        "b_conv1": uni(ks[1], (c1,), input_channels * kk),
        "w_conv2": uni(ks[2], (c2, c1, kernel_size, kernel_size), c1 * kk),
        "b_conv2": uni(ks[3], (c2,), c1 * kk),
        "w_lin":   uni(ks[4], (rnn_dim, input_dim), input_dim),
        "b_lin":   uni(ks[5], (rnn_dim,), input_dim),
    }


def reference(z_t, params, *, kernel_size, stride=2):
    pad = (kernel_size - 1) // 2

    def conv(x, w, b):
        y = lax.conv_general_dilated(
            x, w, (stride, stride), [(pad, pad), (pad, pad)],
            dimension_numbers=("NCHW", "OIHW", "NCHW"),
            precision=lax.Precision.HIGHEST)
        return y + b[None, :, None, None]

    h1 = jax.nn.relu(conv(z_t, params["w_conv1"], params["b_conv1"]))
    h2 = jax.nn.relu(conv(h1, params["w_conv2"], params["b_conv2"]))
    h2 = h2.reshape(z_t.shape[0], -1)                     # torch .view(B, -1): (c, h, w) order
    pre = jnp.dot(h2, params["w_lin"].T, precision=lax.Precision.HIGHEST) + params["b_lin"]
    return jnp.tanh(pre)


# ---------------------------------------------------------------------------
if __name__ == "__main__":
    width = height = 16
    input_channels = 4
    rnn_dim = 32
    flatten_channels = (8, 16)
    kernel_size = 3
    batch = 16          # 2 parallel grid steps of 8 rows each (v7x-friendly)

    input_width = width // 2 ** len(flatten_channels)
    input_height = height // 2 ** len(flatten_channels)
    input_dim = flatten_channels[-1] * input_width * input_height

    key = jax.random.PRNGKey(0)
    k_param, k_x = jax.random.split(key)
    params = init_params(k_param, input_channels, flatten_channels, kernel_size,
                         input_dim, rnn_dim)
    z_t = jax.random.normal(k_x, (batch, input_channels, height, width), jnp.float32)

    out = flattener_forward(z_t, params, kernel_size=kernel_size, batch_tile=8)
    jax.block_until_ready(out)

    ref = reference(z_t, params, kernel_size=kernel_size)
    assert out.shape == (batch, rnn_dim)
    assert jnp.allclose(out, ref, atol=1e-4, rtol=1e-4), float(jnp.max(jnp.abs(out - ref)))
    assert bool(jnp.all(jnp.abs(out) <= 1.0))

    print("KERNEL_OK")
</pallas_src>

<mosaic_0001>
module attributes {stable_mosaic.version = 11 : i64} {
  func.func @_flattener_kernel(%arg0: i32, %arg1: memref<128x324xf32, #tpu.memory_space<vmem>>, %arg2: memref<324x72xf32, #tpu.memory_space<vmem>>, %arg3: memref<16x72xf32, #tpu.memory_space<vmem>>, %arg4: memref<72x16xf32, #tpu.memory_space<vmem>>, %arg5: memref<1x16xf32, #tpu.memory_space<vmem>>, %arg6: memref<256x128xf32, #tpu.memory_space<vmem>>, %arg7: memref<1x128xf32, #tpu.memory_space<vmem>>, %arg8: memref<8x128xf32, #tpu.memory_space<vmem>>, %arg9: memref<8x256xf32, #tpu.memory_space<vmem>>) attributes {dimension_semantics = [#tpu.dimension_semantics<parallel>], iteration_bounds = array<i64: 2>, scalar_prefetch = 0 : i64, scratch_operands = 1 : i64, tpu.core_type = #tpu.core_type<tc>, window_params = [{transform_indices = @transform_0, window_bounds = array<i64: 128, 324>}, {pipeline_mode = #tpu.pipeline_mode<synchronous>, transform_indices = @transform_1, window_bounds = array<i64: 324, 72>}, {pipeline_mode = #tpu.pipeline_mode<synchronous>, transform_indices = @transform_2, window_bounds = array<i64: 16, 72>}, {pipeline_mode = #tpu.pipeline_mode<synchronous>, transform_indices = @transform_3, window_bounds = array<i64: 72, 16>}, {pipeline_mode = #tpu.pipeline_mode<synchronous>, transform_indices = @transform_4, window_bounds = array<i64: 1, 16>}, {pipeline_mode = #tpu.pipeline_mode<synchronous>, transform_indices = @transform_5, window_bounds = array<i64: 256, 128>}, {pipeline_mode = #tpu.pipeline_mode<synchronous>, transform_indices = @transform_6, window_bounds = array<i64: 1, 128>}, {transform_indices = @transform_7, window_bounds = array<i64: 8, 128>}]} {
    %c0 = arith.constant 0 : index
    %c0_0 = arith.constant 0 : index
    %0 = vector.load %arg1[%c0, %c0_0] : memref<128x324xf32, #tpu.memory_space<vmem>>, vector<128x324xf32>
    %c0_1 = arith.constant 0 : index
    %c0_2 = arith.constant 0 : index
    %1 = vector.load %arg2[%c0_1, %c0_2] : memref<324x72xf32, #tpu.memory_space<vmem>>, vector<324x72xf32>
    %cst = arith.constant dense<0.000000e+00> : vector<128x72xf32>
    %2 = tpu.matmul %0, %1, %cst {dimension_numbers = #tpu.dot_dimension_numbers<[1], [0], [0], [1], [0, 0, 1, 1], [], []>} : vector<128x324xf32>, vector<324x72xf32>, vector<128x72xf32> -> vector<128x72xf32>
    %3 = vector.shape_cast %2 : vector<128x72xf32> to vector<8x16x72xf32>
    %c0_3 = arith.constant 0 : index
    %c0_4 = arith.constant 0 : index
    %4 = vector.load %arg3[%c0_3, %c0_4] : memref<16x72xf32, #tpu.memory_space<vmem>>, vector<16x72xf32>
    %5 = vector.shape_cast %4 : vector<16x72xf32> to vector<1x16x72xf32>
    %6 = vector.broadcast %5 : vector<1x16x72xf32> to vector<8x16x72xf32>
    %7 = arith.addf %3, %6 : vector<8x16x72xf32>
    %cst_5 = arith.constant 0.000000e+00 : f32
    %8 = vector.broadcast %cst_5 : f32 to vector<8x16x72xf32>
    %9 = arith.maximumf %7, %8 : vector<8x16x72xf32>
    %10 = vector.shape_cast %9 : vector<8x16x72xf32> to vector<128x72xf32>
    %c0_6 = arith.constant 0 : index
    %c0_7 = arith.constant 0 : index
    %11 = vector.load %arg4[%c0_6, %c0_7] : memref<72x16xf32, #tpu.memory_space<vmem>>, vector<72x16xf32>
    %cst_8 = arith.constant dense<0.000000e+00> : vector<128x16xf32>
    %12 = tpu.matmul %10, %11, %cst_8 {dimension_numbers = #tpu.dot_dimension_numbers<[1], [0], [0], [1], [0, 0, 1, 1], [], []>} : vector<128x72xf32>, vector<72x16xf32>, vector<128x16xf32> -> vector<128x16xf32>
    %c0_9 = arith.constant 0 : index
    %c0_10 = arith.constant 0 : index
    %13 = vector.load %arg5[%c0_9, %c0_10] : memref<1x16xf32, #tpu.memory_space<vmem>>, vector<1x16xf32>
    %14 = vector.broadcast %13 : vector<1x16xf32> to vector<128x16xf32>
    %15 = arith.addf %12, %14 : vector<128x16xf32>
    %cst_11 = arith.constant 0.000000e+00 : f32
    %16 = vector.broadcast %cst_11 : f32 to vector<128x16xf32>
    %17 = arith.maximumf %15, %16 : vector<128x16xf32>
    %18 = vector.shape_cast %17 : vector<128x16xf32> to vector<8x16x16xf32>
    %19 = vector.extract_strided_slice %18 {offsets = [0, 0, 0], sizes = [8, 1, 16], strides = [1, 1, 1]} : vector<8x16x16xf32> to vector<8x1x16xf32>
    %20 = vector.shape_cast %19 : vector<8x1x16xf32> to vector<8x16xf32>
    %c0_12 = arith.constant 0 : index
    %c0_13 = arith.constant 0 : index
    %21 = vector.load %arg9[%c0_12, %c0_13] : memref<8x256xf32, #tpu.memory_space<vmem>>, vector<8x16xf32>
    tpu.vector_store %arg9[%c0_12, %c0_13], %20 {strides = array<i32>} : memref<8x256xf32, #tpu.memory_space<vmem>>, vector<8x16xf32>,
    %22 = vector.extract_strided_slice %18 {offsets = [0, 1, 0], sizes = [8, 1, 16], strides = [1, 1, 1]} : vector<8x16x16xf32> to vector<8x1x16xf32>
    %23 = vector.shape_cast %22 : vector<8x1x16xf32> to vector<8x16xf32>
    %c0_14 = arith.constant 0 : index
    %c16 = arith.constant 16 : index
    %24 = vector.load %arg9[%c0_14, %c16] : memref<8x256xf32, #tpu.memory_space<vmem>>, vector<8x16xf32>
    tpu.vector_store %arg9[%c0_14, %c16], %23 {strides = array<i32>} : memref<8x256xf32, #tpu.memory_space<vmem>>, vector<8x16xf32>,
    %25 = vector.extract_strided_slice %18 {offsets = [0, 2, 0], sizes = [8, 1, 16], strides = [1, 1, 1]} : vector<8x16x16xf32> to vector<8x1x16xf32>
    %26 = vector.shape_cast %25 : vector<8x1x16xf32> to vector<8x16xf32>
    %c0_15 = arith.constant 0 : index
    %c32 = arith.constant 32 : index
    %27 = vector.load %arg9[%c0_15, %c32] : memref<8x256xf32, #tpu.memory_space<vmem>>, vector<8x16xf32>
    tpu.vector_store %arg9[%c0_15, %c32], %26 {strides = array<i32>} : memref<8x256xf32, #tpu.memory_space<vmem>>, vector<8x16xf32>,
    %28 = vector.extract_strided_slice %18 {offsets = [0, 3, 0], sizes = [8, 1, 16], strides = [1, 1, 1]} : vector<8x16x16xf32> to vector<8x1x16xf32>
    %29 = vector.shape_cast %28 : vector<8x1x16xf32> to vector<8x16xf32>
    %c0_16 = arith.constant 0 : index
    %c48 = arith.constant 48 : index
    %30 = vector.load %arg9[%c0_16, %c48] : memref<8x256xf32, #tpu.memory_space<vmem>>, vector<8x16xf32>
    tpu.vector_store %arg9[%c0_16, %c48], %29 {strides = array<i32>} : memref<8x256xf32, #tpu.memory_space<vmem>>, vector<8x16xf32>,
    %31 = vector.extract_strided_slice %18 {offsets = [0, 4, 0], sizes = [8, 1, 16], strides = [1, 1, 1]} : vector<8x16x16xf32> to vector<8x1x16xf32>
    %32 = vector.shape_cast %31 : vector<8x1x16xf32> to vector<8x16xf32>
    %c0_17 = arith.constant 0 : index
    %c64 = arith.constant 64 : index
    %33 = vector.load %arg9[%c0_17, %c64] : memref<8x256xf32, #tpu.memory_space<vmem>>, vector<8x16xf32>
    tpu.vector_store %arg9[%c0_17, %c64], %32 {strides = array<i32>} : memref<8x256xf32, #tpu.memory_space<vmem>>, vector<8x16xf32>,
    %34 = vector.extract_strided_slice %18 {offsets = [0, 5, 0], sizes = [8, 1, 16], strides = [1, 1, 1]} : vector<8x16x16xf32> to vector<8x1x16xf32>
    %35 = vector.shape_cast %34 : vector<8x1x16xf32> to vector<8x16xf32>
    %c0_18 = arith.constant 0 : index
    %c80 = arith.constant 80 : index
    %36 = vector.load %arg9[%c0_18, %c80] : memref<8x256xf32, #tpu.memory_space<vmem>>, vector<8x16xf32>
    tpu.vector_store %arg9[%c0_18, %c80], %35 {strides = array<i32>} : memref<8x256xf32, #tpu.memory_space<vmem>>, vector<8x16xf32>,
    %37 = vector.extract_strided_slice %18 {offsets = [0, 6, 0], sizes = [8, 1, 16], strides = [1, 1, 1]} : vector<8x16x16xf32> to vector<8x1x16xf32>
    %38 = vector.shape_cast %37 : vector<8x1x16xf32> to vector<8x16xf32>
    %c0_19 = arith.constant 0 : index
    %c96 = arith.constant 96 : index
    %39 = vector.load %arg9[%c0_19, %c96] : memref<8x256xf32, #tpu.memory_space<vmem>>, vector<8x16xf32>
    tpu.vector_store %arg9[%c0_19, %c96], %38 {strides = array<i32>} : memref<8x256xf32, #tpu.memory_space<vmem>>, vector<8x16xf32>,
    %40 = vector.extract_strided_slice %18 {offsets = [0, 7, 0], sizes = [8, 1, 16], strides = [1, 1, 1]} : vector<8x16x16xf32> to vector<8x1x16xf32>
    %41 = vector.shape_cast %40 : vector<8x1x16xf32> to vector<8x16xf32>
    %c0_20 = arith.constant 0 : index
    %c112 = arith.constant 112 : index
    %42 = vector.load %arg9[%c0_20, %c112] : memref<8x256xf32, #tpu.memory_space<vmem>>, vector<8x16xf32>
    tpu.vector_store %arg9[%c0_20, %c112], %41 {strides = array<i32>} : memref<8x256xf32, #tpu.memory_space<vmem>>, vector<8x16xf32>,
    %43 = vector.extract_strided_slice %18 {offsets = [0, 8, 0], sizes = [8, 1, 16], strides = [1, 1, 1]} : vector<8x16x16xf32> to vector<8x1x16xf32>
    %44 = vector.shape_cast %43 : vector<8x1x16xf32> to vector<8x16xf32>
    %c0_21 = arith.constant 0 : index
    %c128 = arith.constant 128 : index
    %45 = vector.load %arg9[%c0_21, %c128] : memref<8x256xf32, #tpu.memory_space<vmem>>, vector<8x16xf32>
    tpu.vector_store %arg9[%c0_21, %c128], %44 {strides = array<i32>} : memref<8x256xf32, #tpu.memory_space<vmem>>, vector<8x16xf32>,
    %46 = vector.extract_strided_slice %18 {offsets = [0, 9, 0], sizes = [8, 1, 16], strides = [1, 1, 1]} : vector<8x16x16xf32> to vector<8x1x16xf32>
    %47 = vector.shape_cast %46 : vector<8x1x16xf32> to vector<8x16xf32>
    %c0_22 = arith.constant 0 : index
    %c144 = arith.constant 144 : index
    %48 = vector.load %arg9[%c0_22, %c144] : memref<8x256xf32, #tpu.memory_space<vmem>>, vector<8x16xf32>
    tpu.vector_store %arg9[%c0_22, %c144], %47 {strides = array<i32>} : memref<8x256xf32, #tpu.memory_space<vmem>>, vector<8x16xf32>,
    %49 = vector.extract_strided_slice %18 {offsets = [0, 10, 0], sizes = [8, 1, 16], strides = [1, 1, 1]} : vector<8x16x16xf32> to vector<8x1x16xf32>
    %50 = vector.shape_cast %49 : vector<8x1x16xf32> to vector<8x16xf32>
    %c0_23 = arith.constant 0 : index
    %c160 = arith.constant 160 : index
    %51 = vector.load %arg9[%c0_23, %c160] : memref<8x256xf32, #tpu.memory_space<vmem>>, vector<8x16xf32>
    tpu.vector_store %arg9[%c0_23, %c160], %50 {strides = array<i32>} : memref<8x256xf32, #tpu.memory_space<vmem>>, vector<8x16xf32>,
    %52 = vector.extract_strided_slice %18 {offsets = [0, 11, 0], sizes = [8, 1, 16], strides = [1, 1, 1]} : vector<8x16x16xf32> to vector<8x1x16xf32>
    %53 = vector.shape_cast %52 : vector<8x1x16xf32> to vector<8x16xf32>
    %c0_24 = arith.constant 0 : index
    %c176 = arith.constant 176 : index
    %54 = vector.load %arg9[%c0_24, %c176] : memref<8x256xf32, #tpu.memory_space<vmem>>, vector<8x16xf32>
    tpu.vector_store %arg9[%c0_24, %c176], %53 {strides = array<i32>} : memref<8x256xf32, #tpu.memory_space<vmem>>, vector<8x16xf32>,
    %55 = vector.extract_strided_slice %18 {offsets = [0, 12, 0], sizes = [8, 1, 16], strides = [1, 1, 1]} : vector<8x16x16xf32> to vector<8x1x16xf32>
    %56 = vector.shape_cast %55 : vector<8x1x16xf32> to vector<8x16xf32>
    %c0_25 = arith.constant 0 : index
    %c192 = arith.constant 192 : index
    %57 = vector.load %arg9[%c0_25, %c192] : memref<8x256xf32, #tpu.memory_space<vmem>>, vector<8x16xf32>
    tpu.vector_store %arg9[%c0_25, %c192], %56 {strides = array<i32>} : memref<8x256xf32, #tpu.memory_space<vmem>>, vector<8x16xf32>,
    %58 = vector.extract_strided_slice %18 {offsets = [0, 13, 0], sizes = [8, 1, 16], strides = [1, 1, 1]} : vector<8x16x16xf32> to vector<8x1x16xf32>
    %59 = vector.shape_cast %58 : vector<8x1x16xf32> to vector<8x16xf32>
    %c0_26 = arith.constant 0 : index
    %c208 = arith.constant 208 : index
    %60 = vector.load %arg9[%c0_26, %c208] : memref<8x256xf32, #tpu.memory_space<vmem>>, vector<8x16xf32>
    tpu.vector_store %arg9[%c0_26, %c208], %59 {strides = array<i32>} : memref<8x256xf32, #tpu.memory_space<vmem>>, vector<8x16xf32>,
    %61 = vector.extract_strided_slice %18 {offsets = [0, 14, 0], sizes = [8, 1, 16], strides = [1, 1, 1]} : vector<8x16x16xf32> to vector<8x1x16xf32>
    %62 = vector.shape_cast %61 : vector<8x1x16xf32> to vector<8x16xf32>
    %c0_27 = arith.constant 0 : index
    %c224 = arith.constant 224 : index
    %63 = vector.load %arg9[%c0_27, %c224] : memref<8x256xf32, #tpu.memory_space<vmem>>, vector<8x16xf32>
    tpu.vector_store %arg9[%c0_27, %c224], %62 {strides = array<i32>} : memref<8x256xf32, #tpu.memory_space<vmem>>, vector<8x16xf32>,
    %64 = vector.extract_strided_slice %18 {offsets = [0, 15, 0], sizes = [8, 1, 16], strides = [1, 1, 1]} : vector<8x16x16xf32> to vector<8x1x16xf32>
    %65 = vector.shape_cast %64 : vector<8x1x16xf32> to vector<8x16xf32>
    %c0_28 = arith.constant 0 : index
    %c240 = arith.constant 240 : index
    %66 = vector.load %arg9[%c0_28, %c240] : memref<8x256xf32, #tpu.memory_space<vmem>>, vector<8x16xf32>
    tpu.vector_store %arg9[%c0_28, %c240], %65 {strides = array<i32>} : memref<8x256xf32, #tpu.memory_space<vmem>>, vector<8x16xf32>,
    %c0_29 = arith.constant 0 : index
    %c0_30 = arith.constant 0 : index
    %67 = vector.load %arg9[%c0_29, %c0_30] : memref<8x256xf32, #tpu.memory_space<vmem>>, vector<8x256xf32>
    %c0_31 = arith.constant 0 : index
    %c0_32 = arith.constant 0 : index
    %68 = vector.load %arg6[%c0_31, %c0_32] : memref<256x128xf32, #tpu.memory_space<vmem>>, vector<256x128xf32>
    %cst_33 = arith.constant dense<0.000000e+00> : vector<8x128xf32>
    %69 = tpu.matmul %67, %68, %cst_33 {dimension_numbers = #tpu.dot_dimension_numbers<[1], [0], [0], [1], [0, 0, 1, 1], [], []>} : vector<8x256xf32>, vector<256x128xf32>, vector<8x128xf32> -> vector<8x128xf32>
    %c0_34 = arith.constant 0 : index
    %c0_35 = arith.constant 0 : index
    %70 = vector.load %arg7[%c0_34, %c0_35] : memref<1x128xf32, #tpu.memory_space<vmem>>, vector<1x128xf32>
    %71 = vector.broadcast %70 : vector<1x128xf32> to vector<8x128xf32>
    %72 = arith.addf %69, %71 : vector<8x128xf32>
    %73 = math.tanh %72 : vector<8x128xf32>
    %c0_36 = arith.constant 0 : index
    %c0_37 = arith.constant 0 : index
    %74 = vector.load %arg8[%c0_36, %c0_37] : memref<8x128xf32, #tpu.memory_space<vmem>>, vector<8x128xf32>
    tpu.vector_store %arg8[%c0_36, %c0_37], %73 {strides = array<i32>} : memref<8x128xf32, #tpu.memory_space<vmem>>, vector<8x128xf32>,
    return
  }
  func.func @transform_0(%arg0: i32) -> (i32, i32) {
    %c0_i32 = arith.constant 0 : i32
    %c0_i32_0 = arith.constant 0 : i32
    return %arg0, %c0_i32 : i32, i32
  }
  func.func @transform_1(%arg0: i32) -> (i32, i32) {
    %c0_i32 = arith.constant 0 : i32
    %c0_i32_0 = arith.constant 0 : i32
    %c0_i32_1 = arith.constant 0 : i32
    return %c0_i32, %c0_i32_0 : i32, i32
  }
  func.func @transform_2(%arg0: i32) -> (i32, i32) {
    %c0_i32 = arith.constant 0 : i32
    %c0_i32_0 = arith.constant 0 : i32
    %c0_i32_1 = arith.constant 0 : i32
    return %c0_i32, %c0_i32_0 : i32, i32
  }
  func.func @transform_3(%arg0: i32) -> (i32, i32) {
    %c0_i32 = arith.constant 0 : i32
    %c0_i32_0 = arith.constant 0 : i32
    %c0_i32_1 = arith.constant 0 : i32
    return %c0_i32, %c0_i32_0 : i32, i32
  }
  func.func @transform_4(%arg0: i32) -> (i32, i32) {
    %c0_i32 = arith.constant 0 : i32
    %c0_i32_0 = arith.constant 0 : i32
    %c0_i32_1 = arith.constant 0 : i32
    return %c0_i32, %c0_i32_0 : i32, i32
  }
  func.func @transform_5(%arg0: i32) -> (i32, i32) {
    %c0_i32 = arith.constant 0 : i32
    %c0_i32_0 = arith.constant 0 : i32
    %c0_i32_1 = arith.constant 0 : i32
    return %c0_i32, %c0_i32_0 : i32, i32
  }
  func.func @transform_6(%arg0: i32) -> (i32, i32) {
    %c0_i32 = arith.constant 0 : i32
    %c0_i32_0 = arith.constant 0 : i32
    %c0_i32_1 = arith.constant 0 : i32
    return %c0_i32, %c0_i32_0 : i32, i32
  }
  func.func @transform_7(%arg0: i32) -> (i32, i32) {
    %c0_i32 = arith.constant 0 : i32
    %c0_i32_0 = arith.constant 0 : i32
    return %arg0, %c0_i32 : i32, i32
  }
}

</mosaic_0001>

<llo_original>
// kernel: tpu_custom_call.1
$region0: #{tpu_custom_call.1}
  #allocation0 [shape = 'u32[]', space=smem, size = 0x4, offset = 0x4, fixed_abs, tag = 'smem constant byte address 0x4 - core index']
  #allocation1 [shape = 'u32[144,128]{1,0:T(1,128)}', space=vmem, size = 0x12000, scoped, tag = 'internal scratch']
  #allocation2 [shape = 'f32[8,256]{1,0:T(8,128)}', space=vmem, size = 0x2000, scoped, tag = 'scratch operand']
  %s0 = inlined_call_operand.vmem [shape: f32[256,324], index: 0, kind: input, shape index: {}]
  %s1 = inlined_call_operand.vmem [shape: f32[324,72], index: 1, kind: input, shape index: {}]
  %s2 = inlined_call_operand.vmem [shape: f32[16,72], index: 2, kind: input, shape index: {}]
  %s3 = inlined_call_operand.vmem [shape: f32[72,16], index: 3, kind: input, shape index: {}]
  %s4 = inlined_call_operand.vmem [shape: f32[1,16], index: 4, kind: input, shape index: {}]
  %s5 = inlined_call_operand.vmem [shape: f32[256,128], index: 5, kind: input, shape index: {}]
  %s6 = inlined_call_operand.vmem [shape: f32[1,128], index: 6, kind: input, shape index: {}]
  %s7 = inlined_call_operand.hbm [shape: f32[16,128], index: 7, kind: output, shape index: {}]
  %s8 = sld [smem:[#allocation0]]
  $region61: #{tpu_custom_call.1} parent=0
    _
  %s10 = ssub.s32 1, %s8
  %s11 = scalar_select 0, %s10, %s8
  $region1: #{tpu_custom_call.1} parent=0
    #allocation3 [shape = 'u8[8192]{0}', space=vmem, size = 0x2000, scoped, tag = 'output window, operand 0']
    #allocation4 [shape = 's32[2]{0}', space=sflag, size = 0x8, scoped, tag = 'scoped memory for tpu_custom_call.1']
    %12 = vsyncpa [#allocation4], 0
    %s13 = scalar_lea.sflag [#allocation4], 1
    %14 = vsyncpa %s13, 0
    loop: start=0, step=1, limit=4
    $region2: #{tpu_custom_call.1} parent=1 // loop_pre_header
      _
    $region3: #{tpu_custom_call.1} parent=1 // loop_header
      %s16 = sphi 0, %s20
      %p17 = scmp.ge.s32.totalorder %s16, 4
      %s26 = sphi 0, %s28
      %s29 = sphi 0, %s26
      %s30 = sphi 0, %s29
      %s46 = sphi 0, %s30
      %s50 = sphi 0, %s50
      %s52 = sphi 0, %s50
      %s53 = sphi 0, %s52
      %s67 = sphi 0, %s53
      %s71 = sphi 0, %s71
      %s73 = sphi 0, %s71
      %s74 = sphi 0, %s73
      %s88 = sphi 0, %s74
      %s92 = sphi 0, %s92
      %s94 = sphi 0, %s92
      %s95 = sphi 0, %s94
      %s109 = sphi 0, %s95
      %s113 = sphi 0, %s113
      %s115 = sphi 0, %s113
      %s116 = sphi 0, %s115
      %s130 = sphi 0, %s116
      %s134 = sphi 0, %s134
      %s136 = sphi 0, %s134
      %s137 = sphi 0, %s136
      %s151 = sphi 0, %s137
      %s155 = sphi 0, %s155
      %s157 = sphi 0, %s155
      %s158 = sphi 0, %s157
      %s172 = sphi 0, %s158
      %s178 = sphi 0, %s180
      %s181 = sphi 0, %s178
      %s182 = sphi 0, %s181
      %s198 = sphi 0, %s182
    $region4: #{tpu_custom_call.1} parent=1 // loop_header_branch
      %19 = sbr.rel (%p17) target = $region8
    $region5: #{tpu_custom_call.1} parent=1 // loop_body
      %s21 = ssub.s32 %s16, 1
      %s22 = ssub.s32 %s16, 2
      %s23 = sadd.s32 %s16, 1
      %s24 = ssub.s32 %s16, %s23
      %p25 = scmp.eq.s32.totalorder %s24, 0
      %s27 = sadd.s32 %s26, 1
      %s28 = scalar_select %p25, %s26, %s27
      %p31 = pneg %p25
      %p32 = scmp.eq.s32.totalorder %s16, 1
      %p33 = por %p31, %p32
      %p34 = scmp.ne.s32.totalorder %s26, %s29
      %p35 = scmp.eq.s32.totalorder %s16, 0
      %p36 = por %p34, %p35
      %p37 = scmp.ne.s32.totalorder %s26, %s29
      %p38 = scmp.eq.s32.totalorder %s21, 1
      %p39 = por %p37, %p38
      %p40 = scmp.ne.s32.totalorder %s29, %s30
      %p41 = scmp.eq.s32.totalorder %s21, 0
      %p42 = por %p40, %p41
      %p43 = scmp.ne.s32.totalorder %s29, %s30
      %p44 = scmp.eq.s32.totalorder %s22, 1
      %p45 = por %p43, %p44
      %p47 = scmp.ne.s32.totalorder %s30, %s46
      %p48 = scmp.eq.s32.totalorder %s22, 0
      %p49 = por %p47, %p48
      %s51 = sadd.s32 %s50, 1
      %p54 = scmp.eq.s32.totalorder %s16, 1
      %p55 = scmp.ne.s32.totalorder %s50, %s52
      %p56 = scmp.eq.s32.totalorder %s16, 0
      %p57 = por %p55, %p56
      %p58 = scmp.ne.s32.totalorder %s50, %s52
      %p59 = scmp.eq.s32.totalorder %s21, 1
      %p60 = por %p58, %p59
      %p61 = scmp.ne.s32.totalorder %s52, %s53
      %p62 = scmp.eq.s32.totalorder %s21, 0
      %p63 = por %p61, %p62
      %p64 = scmp.ne.s32.totalorder %s52, %s53
      %p65 = scmp.eq.s32.totalorder %s22, 1
      %p66 = por %p64, %p65
      %p68 = scmp.ne.s32.totalorder %s53, %s67
      %p69 = scmp.eq.s32.totalorder %s22, 0
      %p70 = por %p68, %p69
      %s72 = sadd.s32 %s71, 1
      %p75 = scmp.eq.s32.totalorder %s16, 1
      %p76 = scmp.ne.s32.totalorder %s71, %s73
      %p77 = scmp.eq.s32.totalorder %s16, 0
      %p78 = por %p76, %p77
      %p79 = scmp.ne.s32.totalorder %s71, %s73
      %p80 = scmp.eq.s32.totalorder %s21, 1
      %p81 = por %p79, %p80
      %p82 = scmp.ne.s32.totalorder %s73, %s74
      %p83 = scmp.eq.s32.totalorder %s21, 0
      %p84 = por %p82, %p83
      %p85 = scmp.ne.s32.totalorder %s73, %s74
      %p86 = scmp.eq.s32.totalorder %s22, 1
      %p87 = por %p85, %p86
      %p89 = scmp.ne.s32.totalorder %s74, %s88
      %p90 = scmp.eq.s32.totalorder %s22, 0
      %p91 = por %p89, %p90
      %s93 = sadd.s32 %s92, 1
      %p96 = scmp.eq.s32.totalorder %s16, 1
      %p97 = scmp.ne.s32.totalorder %s92, %s94
      %p98 = scmp.eq.s32.totalorder %s16, 0
      %p99 = por %p97, %p98
      %p100 = scmp.ne.s32.totalorder %s92, %s94
      %p101 = scmp.eq.s32.totalorder %s21, 1
      %p102 = por %p100, %p101
      %p103 = scmp.ne.s32.totalorder %s94, %s95
      %p104 = scmp.eq.s32.totalorder %s21, 0
      %p105 = por %p103, %p104
      %p106 = scmp.ne.s32.totalorder %s94, %s95
      %p107 = scmp.eq.s32.totalorder %s22, 1
      %p108 = por %p106, %p107
      %p110 = scmp.ne.s32.totalorder %s95, %s109
      %p111 = scmp.eq.s32.totalorder %s22, 0
      %p112 = por %p110, %p111
      %s114 = sadd.s32 %s113, 1
      %p117 = scmp.eq.s32.totalorder %s16, 1
      %p118 = scmp.ne.s32.totalorder %s113, %s115
      %p119 = scmp.eq.s32.totalorder %s16, 0
      %p120 = por %p118, %p119
      %p121 = scmp.ne.s32.totalorder %s113, %s115
      %p122 = scmp.eq.s32.totalorder %s21, 1
      %p123 = por %p121, %p122
      %p124 = scmp.ne.s32.totalorder %s115, %s116
      %p125 = scmp.eq.s32.totalorder %s21, 0
      %p126 = por %p124, %p125
      %p127 = scmp.ne.s32.totalorder %s115, %s116
      %p128 = scmp.eq.s32.totalorder %s22, 1
      %p129 = por %p127, %p128
      %p131 = scmp.ne.s32.totalorder %s116, %s130
      %p132 = scmp.eq.s32.totalorder %s22, 0
      %p133 = por %p131, %p132
      %s135 = sadd.s32 %s134, 1
      %p138 = scmp.eq.s32.totalorder %s16, 1
      %p139 = scmp.ne.s32.totalorder %s134, %s136
      %p140 = scmp.eq.s32.totalorder %s16, 0
      %p141 = por %p139, %p140
      %p142 = scmp.ne.s32.totalorder %s134, %s136
      %p143 = scmp.eq.s32.totalorder %s21, 1
      %p144 = por %p142, %p143
      %p145 = scmp.ne.s32.totalorder %s136, %s137
      %p146 = scmp.eq.s32.totalorder %s21, 0
      %p147 = por %p145, %p146
      %p148 = scmp.ne.s32.totalorder %s136, %s137
      %p149 = scmp.eq.s32.totalorder %s22, 1
      %p150 = por %p148, %p149
      %p152 = scmp.ne.s32.totalorder %s137, %s151
      %p153 = scmp.eq.s32.totalorder %s22, 0
      %p154 = por %p152, %p153
      %s156 = sadd.s32 %s155, 1
      %p159 = scmp.eq.s32.totalorder %s16, 1
      %p160 = scmp.ne.s32.totalorder %s155, %s157
      %p161 = scmp.eq.s32.totalorder %s16, 0
      %p162 = por %p160, %p161
      %p163 = scmp.ne.s32.totalorder %s155, %s157
      %p164 = scmp.eq.s32.totalorder %s21, 1
      %p165 = por %p163, %p164
      %p166 = scmp.ne.s32.totalorder %s157, %s158
      %p167 = scmp.eq.s32.totalorder %s21, 0
      %p168 = por %p166, %p167
      %p169 = scmp.ne.s32.totalorder %s157, %s158
      %p170 = scmp.eq.s32.totalorder %s22, 1
      %p171 = por %p169, %p170
      %p173 = scmp.ne.s32.totalorder %s158, %s172
      %p174 = scmp.eq.s32.totalorder %s22, 0
      %p175 = por %p173, %p174
      %s176 = ssub.s32 %s16, %s23
      %p177 = scmp.eq.s32.totalorder %s176, 0
      %s179 = sadd.s32 %s178, 1
      %s180 = scalar_select %p177, %s178, %s179
      %p183 = pneg %p177
      %p184 = scmp.eq.s32.totalorder %s16, 1
      %p185 = por %p183, %p184
      %p186 = scmp.ne.s32.totalorder %s178, %s181
      %p187 = scmp.eq.s32.totalorder %s16, 0
      %p188 = por %p186, %p187
      %p189 = scmp.ne.s32.totalorder %s178, %s181
      %p190 = scmp.eq.s32.totalorder %s21, 1
      %p191 = por %p189, %p190
      %p192 = scmp.ne.s32.totalorder %s181, %s182
      %p193 = scmp.eq.s32.totalorder %s21, 0
      %p194 = por %p192, %p193
      %p195 = scmp.ne.s32.totalorder %s181, %s182
      %p196 = scmp.eq.s32.totalorder %s22, 1
      %p197 = por %p195, %p196
      %p199 = scmp.ne.s32.totalorder %s182, %s198
      %p200 = scmp.eq.s32.totalorder %s22, 0
      %p201 = por %p199, %p200
      %p202 = scmp.le.s32.totalorder 1, %s16
      %p203 = scmp.lt.s32.totalorder %s16, 3
      %p204 = pnand %p202, %p203
      %p205 = pneg %p204
      // Predicated region
      $region9: #{tpu_custom_call.1} parent=5 // pred_check
        _
      $region10: #{tpu_custom_call.1} parent=5 // pred_check_branch
        %207 = sbr.rel (%p204) target = $region12
      $region11: #{tpu_custom_call.1} parent=5 // pred_region
        %s208 = ssub.s32 %s16, 1
        // Predicated region
        $region13: #{tpu_custom_call.1} parent=11 // pred_check
          %p209 = pneg %p63
        $region14: #{tpu_custom_call.1} parent=11 // pred_check_branch
          %211 = sbr.rel (%p209) target = $region16
        $region15: #{tpu_custom_call.1} parent=11 // pred_region
          _
        $region16: #{tpu_custom_call.1} parent=11 // pred_fallthru
          _
        // Predicated region
        $region17: #{tpu_custom_call.1} parent=11 // pred_check
          %p212 = pneg %p84
        $region18: #{tpu_custom_call.1} parent=11 // pred_check_branch
          %214 = sbr.rel (%p212) target = $region20
        $region19: #{tpu_custom_call.1} parent=11 // pred_region
          _
        $region20: #{tpu_custom_call.1} parent=11 // pred_fallthru
          _
        // Predicated region
        $region21: #{tpu_custom_call.1} parent=11 // pred_check
          %p215 = pneg %p105
        $region22: #{tpu_custom_call.1} parent=11 // pred_check_branch
          %217 = sbr.rel (%p215) target = $region24
        $region23: #{tpu_custom_call.1} parent=11 // pred_region
          _
        $region24: #{tpu_custom_call.1} parent=11 // pred_fallthru
          _
        // Predicated region
        $region25: #{tpu_custom_call.1} parent=11 // pred_check
          %p218 = pneg %p126
        $region26: #{tpu_custom_call.1} parent=11 // pred_check_branch
          %220 = sbr.rel (%p218) target = $region28
        $region27: #{tpu_custom_call.1} parent=11 // pred_region
          _
        $region28: #{tpu_custom_call.1} parent=11 // pred_fallthru
          _
        // Predicated region
        $region29: #{tpu_custom_call.1} parent=11 // pred_check
          %p221 = pneg %p147
        $region30: #{tpu_custom_call.1} parent=11 // pred_check_branch
          %223 = sbr.rel (%p221) target = $region32
        $region31: #{tpu_custom_call.1} parent=11 // pred_region
          _
        $region32: #{tpu_custom_call.1} parent=11 // pred_fallthru
          _
        // Predicated region
        $region33: #{tpu_custom_call.1} parent=11 // pred_check
          %p224 = pneg %p168
        $region34: #{tpu_custom_call.1} parent=11 // pred_check_branch
          %226 = sbr.rel (%p224) target = $region36
        $region35: #{tpu_custom_call.1} parent=11 // pred_region
          _
        $region36: #{tpu_custom_call.1} parent=11 // pred_fallthru
          _
      $region12: #{tpu_custom_call.1} parent=5 // pred_fallthru
        _
      %p227 = scmp.lt.s32.totalorder %s16, 2
      // Predicated region
      $region37: #{tpu_custom_call.1} parent=5 // pred_check
        %p228 = pneg %p227
      $region38: #{tpu_custom_call.1} parent=5 // pred_check_branch
        %230 = sbr.rel (%p228) target = $region40
      $region39: #{tpu_custom_call.1} parent=5 // pred_region
        // Predicated region
        $region41: #{tpu_custom_call.1} parent=39 // pred_check
          %p231 = pneg %p36
        $region42: #{tpu_custom_call.1} parent=39 // pred_check_branch
          %233 = sbr.rel (%p231) target = $region44
        $region43: #{tpu_custom_call.1} parent=39 // pred_region
          %s234 = smul.u32 16, %s16
          %p235 = scmp.lt.s32.totalorder %s234, 31
          %s236 = scalar_select %p235, %s234, 31
          %s237 = smul.addr %s236, 3
          %s238 = smul.addr %s237, 8
          %s239 = scalar_lea.vmem %s0, %s238
          %s240 = smul.u32 16, %s16
        $region44: #{tpu_custom_call.1} parent=39 // pred_fallthru
          _
      $region40: #{tpu_custom_call.1} parent=5 // pred_fallthru
        _
      %p241 = scmp.le.s32.totalorder 1, %s16
      %p242 = scmp.lt.s32.totalorder %s16, 3
      %p243 = pnand %p241, %p242
      %p244 = pneg %p243
      // Predicated region
      $region45: #{tpu_custom_call.1} parent=5 // pred_check
        _
      $region46: #{tpu_custom_call.1} parent=5 // pred_check_branch
        %246 = sbr.rel (%p243) target = $region48
      $region47: #{tpu_custom_call.1} parent=5 // pred_region
        %s247 = ssub.s32 %s16, 1
        %s248 = smul.u32 16, %s21
        %p249 = scmp.lt.s32.totalorder %s248, 31
        %s250 = scalar_select %p249, %s248, 31
        %s251 = smul.addr %s250, 3
        %s252 = smul.addr %s251, 8
        %s253 = scalar_lea.vmem %s0, %s252
        %p254 = pneg %p42
        %p255 = pneg %p39
        %p256 = pneg %p63
        %p257 = pneg %p60
        %p258 = pneg %p84
        %p259 = pneg %p81
        %p260 = pneg %p105
        %p261 = pneg %p102
        %p262 = pneg %p126
        %p263 = pneg %p123
        %p264 = pneg %p147
        %p265 = pneg %p144
        %p266 = pneg %p168
        %p267 = pneg %p165
        %p268 = pneg %p194
        %p269 = pneg %p191
        %s270 = sand.u32 %s181, 1
        %s271 = scalar_lea.sflag [#allocation4], %s270
        %s272 = sand.u32 %s181, 1
        %s273 = smul.addr %s272, 8
        %s274 = scalar_lea.vmem [#allocation3], %s273
        %s275 = smul.u32 16, %s21
        %p276 = scmp.lt.s32.totalorder %s275, 31
        %s277 = scalar_select %p276, %s275, 31
        %s278 = smul.addr %s277, 3
        %s279 = smul.addr %s278, 8
        %s280 = scalar_lea.vmem %s0, %s279
        %s281 = smul.u32 16, %s21
        %v282 = vld [vmem:[%s280] sm:$0xff]
        %v283 = vld [vmem:[%s280 + $0x8] sm:$0xff]
        %v284 = vld [vmem:[%s280 + $0x10] sm:$0xff]
        %v285 = vld [vmem:[%s280 + $0x18] sm:$0xff]
        %v286 = vld [vmem:[%s280 + $0x20] sm:$0xff]
        %v287 = vld [vmem:[%s280 + $0x28] sm:$0xff]
        %v288 = vld [vmem:[%s280 + $0x30] sm:$0xff]
        %v289 = vld [vmem:[%s280 + $0x38] sm:$0xff]
        %v290 = vld [vmem:[%s280 + $0x40] sm:$0xff]
        %v291 = vld [vmem:[%s280 + $0x48] sm:$0xff]
        %v292 = vld [vmem:[%s280 + $0x50] sm:$0xff]
        %v293 = vld [vmem:[%s280 + $0x58] sm:$0xff]
        %v294 = vld [vmem:[%s280 + $0x60] sm:$0xff]
        %v295 = vld [vmem:[%s280 + $0x68] sm:$0xff]
        %v296 = vld [vmem:[%s280 + $0x70] sm:$0xff]
        %v297 = vld [vmem:[%s280 + $0x78] sm:$0xff]
        %v298 = vld [vmem:[%s280 + $0x80] sm:$0xff]
        %v299 = vld [vmem:[%s280 + $0x88] sm:$0xff]
        %v300 = vld [vmem:[%s280 + $0x90] sm:$0xff]
        %v301 = vld [vmem:[%s280 + $0x98] sm:$0xff]
        %v302 = vld [vmem:[%s280 + $0xa0] sm:$0xff]
        %v303 = vld [vmem:[%s280 + $0xa8] sm:$0xff]
        %v304 = vld [vmem:[%s280 + $0xb0] sm:$0xff]
        %v305 = vld [vmem:[%s280 + $0xb8] sm:$0xff]
        %v306 = vld [vmem:[%s280 + $0xc0] sm:$0xff]
        %v307 = vld [vmem:[%s280 + $0xc8] sm:$0xff]
        %v308 = vld [vmem:[%s280 + $0xd0] sm:$0xff]
        %v309 = vld [vmem:[%s280 + $0xd8] sm:$0xff]
        %v310 = vld [vmem:[%s280 + $0xe0] sm:$0xff]
        %v311 = vld [vmem:[%s280 + $0xe8] sm:$0xff]
        %v312 = vld [vmem:[%s280 + $0xf0] sm:$0xff]
        %v313 = vld [vmem:[%s280 + $0xf8] sm:$0xff]
        %v314 = vld [vmem:[%s280 + $0x100] sm:$0xff]
        %v315 = vld [vmem:[%s280 + $0x108] sm:$0xff]
        %v316 = vld [vmem:[%s280 + $0x110] sm:$0xff]
        %v317 = vld [vmem:[%s280 + $0x118] sm:$0xff]
        %v318 = vld [vmem:[%s280 + $0x120] sm:$0xff]
        %v319 = vld [vmem:[%s280 + $0x128] sm:$0xff]
        %v320 = vld [vmem:[%s280 + $0x130] sm:$0xff]
        %v321 = vld [vmem:[%s280 + $0x138] sm:$0xff]
        %v322 = vld [vmem:[%s280 + $0x140] sm:$0xff]
        %v323 = vld [vmem:[%s280 + $0x148] sm:$0xff]
        %v324 = vld [vmem:[%s280 + $0x150] sm:$0xff]
        %v325 = vld [vmem:[%s280 + $0x158] sm:$0xff]
        %v326 = vld [vmem:[%s280 + $0x160] sm:$0xff]
        %v327 = vld [vmem:[%s280 + $0x168] sm:$0xff]
        %v328 = vld [vmem:[%s280 + $0x170] sm:$0xff]
        %v329 = vld [vmem:[%s280 + $0x178] sm:$0xff]
        %v330 = vld [vmem:[%s1] sm:$0xff]
        %v331 = vld [vmem:[%s1 + $0x8] sm:$0xff]
        %v332 = vld [vmem:[%s1 + $0x10] sm:$0xff]
        %v333 = vld [vmem:[%s1 + $0x18] sm:$0xff]
        %v334 = vld [vmem:[%s1 + $0x20] sm:$0xff]
        %v335 = vld [vmem:[%s1 + $0x28] sm:$0xff]
        %v336 = vld [vmem:[%s1 + $0x30] sm:$0xff]
        %v337 = vld [vmem:[%s1 + $0x38] sm:$0xff]
        %v338 = vld [vmem:[%s1 + $0x40] sm:$0xff]
        %v339 = vld [vmem:[%s1 + $0x48] sm:$0xff]
        %v340 = vld [vmem:[%s1 + $0x50] sm:$0xff]
        %v341 = vld [vmem:[%s1 + $0x58] sm:$0xff]
        %v342 = vld [vmem:[%s1 + $0x60] sm:$0xff]
        %v343 = vld [vmem:[%s1 + $0x68] sm:$0xff]
        %v344 = vld [vmem:[%s1 + $0x70] sm:$0xff]
        %v345 = vld [vmem:[%s1 + $0x78] sm:$0xff]
        %v346 = vld [vmem:[%s1 + $0x80] sm:$0xff]
        %v347 = vld [vmem:[%s1 + $0x88] sm:$0xff]
        %v348 = vld [vmem:[%s1 + $0x90] sm:$0xff]
        %v349 = vld [vmem:[%s1 + $0x98] sm:$0xff]
        %v350 = vld [vmem:[%s1 + $0xa0] sm:$0xff]
        %v351 = vld [vmem:[%s1 + $0xa8] sm:$0xff]
        %v352 = vld [vmem:[%s1 + $0xb0] sm:$0xff]
        %v353 = vld [vmem:[%s1 + $0xb8] sm:$0xff]
        %v354 = vld [vmem:[%s1 + $0xc0] sm:$0xff]
        %v355 = vld [vmem:[%s1 + $0xc8] sm:$0xff]
        %v356 = vld [vmem:[%s1 + $0xd0] sm:$0xff]
        %v357 = vld [vmem:[%s1 + $0xd8] sm:$0xff]
        %v358 = vld [vmem:[%s1 + $0xe0] sm:$0xff]
        %v359 = vld [vmem:[%s1 + $0xe8] sm:$0xff]
        %v360 = vld [vmem:[%s1 + $0xf0] sm:$0xff]
        %v361 = vld [vmem:[%s1 + $0xf8] sm:$0xff]
        %v362 = vld [vmem:[%s1 + $0x100] sm:$0xff]
        %v363 = vld [vmem:[%s1 + $0x108] sm:$0xff]
        %v364 = vld [vmem:[%s1 + $0x110] sm:$0xff]
        %v365 = vld [vmem:[%s1 + $0x118] sm:$0xff]
        %v366 = vld [vmem:[%s1 + $0x120] sm:$0xff]
        %v367 = vld [vmem:[%s1 + $0x128] sm:$0xff]
        %v368 = vld [vmem:[%s1 + $0x130] sm:$0xff]
        %v369 = vld [vmem:[%s1 + $0x138] sm:$0xff]
        %v370 = vld [vmem:[%s1 + $0x140] sm:$0xf]
        %vm371 = vcmask 556032
        %v373 = vsel %vm371, %v284, 0
        %v376 = vsel %vm371, %v287, 0
        %v379 = vsel %vm371, %v290, 0
        %v382 = vsel %vm371, %v293, 0
        %v385 = vsel %vm371, %v296, 0
        %v388 = vsel %vm371, %v299, 0
        %v391 = vsel %vm371, %v302, 0
        %v394 = vsel %vm371, %v305, 0
        %v397 = vsel %vm371, %v308, 0
        %v400 = vsel %vm371, %v311, 0
        %v403 = vsel %vm371, %v314, 0
        %v406 = vsel %vm371, %v317, 0
        %v409 = vsel %vm371, %v320, 0
        %v412 = vsel %vm371, %v323, 0
        %v415 = vsel %vm371, %v326, 0
        %v418 = vsel %vm371, %v329, 0
        %vm420 = vcmask 1043456
        %v422 = vsel %vm420, %v370, 0
        %424 = vmatprep.subr.mxu0 0.0
        %425 = vmatpush1.msra.mxu0 %v330
        %426 = vmatprep.subr.mxu0 0.0
        %427 = vmatpush1.msra.mxu0 %v331
        %428 = vmatprep.subr.mxu0 0.0
        %429 = vmatpush1.msra.mxu0 %v332
        %430 = vmatprep.subr.mxu0 0.0
        %431 = vmatpush1.msra.mxu0 %v333
        %432 = vmatprep.subr.mxu0 0.0
        %433 = vmatpush1.msra.mxu0 %v334
        %434 = vmatprep.subr.mxu0 0.0
        %435 = vmatpush1.msra.mxu0 %v335
        %436 = vmatprep.subr.mxu0 0.0
        %437 = vmatpush1.msra.mxu0 %v336
        %438 = vmatprep.subr.mxu0 0.0
        %439 = vmatpush1.msra.mxu0 %v337
        %440 = vmatprep.subr.mxu0 0.0
        %441 = vmatpush1.msra.mxu0 %v338
        %442 = vmatprep.subr.mxu0 0.0
        %443 = vmatpush1.msra.mxu0 %v339
        %444 = vmatprep.subr.mxu0 0.0
        %445 = vmatpush1.msra.mxu0 %v340
        %446 = vmatprep.subr.mxu0 0.0
        %447 = vmatpush1.msra.mxu0 %v341
        %448 = vmatprep.subr.mxu0 0.0
        %449 = vmatpush1.msra.mxu0 %v342
        %450 = vmatprep.subr.mxu0 0.0
        %451 = vmatpush1.msra.mxu0 %v343
        %452 = vmatprep.subr.mxu0 0.0
        %453 = vmatpush1.msra.mxu0 %v344
        %454 = vmatprep.subr.mxu0 0.0
        %455 = vmatpush1.msra.mxu0 %v345
        %456 = vmatprep.subr.mxu0 0.0
        %457 = vmatpush1.msra.mxu0 %v346
        %458 = vmatprep.subr.mxu0 0.0
        %459 = vmatpush1.msra.mxu0 %v347
        %460 = vmatprep.subr.mxu0 0.0
        %461 = vmatpush1.msra.mxu0 %v348
        %462 = vmatprep.subr.mxu0 0.0
        %463 = vmatpush1.msra.mxu0 %v349
        %464 = vmatprep.subr.mxu0 0.0
        %465 = vmatpush1.msra.mxu0 %v350
        %466 = vmatprep.subr.mxu0 0.0
        %467 = vmatpush1.msra.mxu0 %v351
        %468 = vmatprep.subr.mxu0 0.0
        %469 = vmatpush1.msra.mxu0 %v352
        %470 = vmatprep.subr.mxu0 0.0
        %471 = vmatpush1.msra.mxu0 %v353
        %472 = vmatprep.subr.mxu0 0.0
        %473 = vmatpush1.msra.mxu0 %v354
        %474 = vmatprep.subr.mxu0 0.0
        %475 = vmatpush1.msra.mxu0 %v355
        %476 = vmatprep.subr.mxu0 0.0
        %477 = vmatpush1.msra.mxu0 %v356
        %478 = vmatprep.subr.mxu0 0.0
        %479 = vmatpush1.msra.mxu0 %v357
        %480 = vmatprep.subr.mxu0 0.0
        %481 = vmatpush1.msra.mxu0 %v358
        %482 = vmatprep.subr.mxu0 0.0
        %483 = vmatpush1.msra.mxu0 %v359
        %484 = vmatprep.subr.mxu0 0.0
        %485 = vmatpush1.msra.mxu0 %v360
        %486 = vmatprep.subr.mxu0 0.0
        %487 = vmatpush1.msra.mxu0 %v361
        %488 = vmatprep.mubr.f32.mxu0 %v283
        %489 = vmatmul.mubr.f32.gmra.mrb[0].mxu0 %v282
        %v490 = vpop.f32.mrb[0].mxu0
        %v491 = vadd.f32 0.0, %v490
        %v492 = vpop.f32.mrb[0].mxu0
        %493 = vmatprep.mubr.f32.mxu0 %v286
        %494 = vmatmul.mubr.f32.gmra.mrb[0].mxu0 %v285
        %v495 = vpop.f32.mrb[0].mxu0
        %v496 = vadd.f32 0.0, %v495
        %v497 = vpop.f32.mrb[0].mxu0
        %498 = vmatprep.mubr.f32.mxu0 %v289
        %499 = vmatmul.mubr.f32.gmra.mrb[0].mxu0 %v288
        %v500 = vpop.f32.mrb[0].mxu0
        %v501 = vadd.f32 0.0, %v500
        %v502 = vpop.f32.mrb[0].mxu0
        %503 = vmatprep.mubr.f32.mxu0 %v292
        %504 = vmatmul.mubr.f32.gmra.mrb[0].mxu0 %v291
        %v505 = vpop.f32.mrb[0].mxu0
        %v506 = vadd.f32 0.0, %v505
        %v507 = vpop.f32.mrb[0].mxu0
        %508 = vmatprep.mubr.f32.mxu0 %v295
        %509 = vmatmul.mubr.f32.gmra.mrb[0].mxu0 %v294
        %v510 = vpop.f32.mrb[0].mxu0
        %v511 = vadd.f32 0.0, %v510
        %v512 = vpop.f32.mrb[0].mxu0
        %513 = vmatprep.mubr.f32.mxu0 %v298
        %514 = vmatmul.mubr.f32.gmra.mrb[0].mxu0 %v297
        %v515 = vpop.f32.mrb[0].mxu0
        %v516 = vadd.f32 0.0, %v515
        %v517 = vpop.f32.mrb[0].mxu0
        %518 = vmatprep.mubr.f32.mxu0 %v301
        %519 = vmatmul.mubr.f32.gmra.mrb[0].mxu0 %v300
        %v520 = vpop.f32.mrb[0].mxu0
        %v521 = vadd.f32 0.0, %v520
        %v522 = vpop.f32.mrb[0].mxu0
        %523 = vmatprep.mubr.f32.mxu0 %v304
        %524 = vmatmul.mubr.f32.gmra.mrb[0].mxu0 %v303
        %v525 = vpop.f32.mrb[0].mxu0
        %v526 = vadd.f32 0.0, %v525
        %v527 = vpop.f32.mrb[0].mxu0
        %528 = vmatprep.mubr.f32.mxu0 %v307
        %529 = vmatmul.mubr.f32.gmra.mrb[0].mxu0 %v306
        %v530 = vpop.f32.mrb[0].mxu0
        %v531 = vadd.f32 0.0, %v530
        %v532 = vpop.f32.mrb[0].mxu0
        %533 = vmatprep.mubr.f32.mxu0 %v310
        %534 = vmatmul.mubr.f32.gmra.mrb[0].mxu0 %v309
        %v535 = vpop.f32.mrb[0].mxu0
        %v536 = vadd.f32 0.0, %v535
        %v537 = vpop.f32.mrb[0].mxu0
        %538 = vmatprep.mubr.f32.mxu0 %v313
        %539 = vmatmul.mubr.f32.gmra.mrb[0].mxu0 %v312
        %v540 = vpop.f32.mrb[0].mxu0
        %v541 = vadd.f32 0.0, %v540
        %v542 = vpop.f32.mrb[0].mxu0
        %543 = vmatprep.mubr.f32.mxu0 %v316
        %544 = vmatmul.mubr.f32.gmra.mrb[0].mxu0 %v315
        %v545 = vpop.f32.mrb[0].mxu0
        %v546 = vadd.f32 0.0, %v545
        %v547 = vpop.f32.mrb[0].mxu0
        %548 = vmatprep.mubr.f32.mxu0 %v319
        %549 = vmatmul.mubr.f32.gmra.mrb[0].mxu0 %v318
        %v550 = vpop.f32.mrb[0].mxu0
        %v551 = vadd.f32 0.0, %v550
        %v552 = vpop.f32.mrb[0].mxu0
        %553 = vmatprep.mubr.f32.mxu0 %v322
        %554 = vmatmul.mubr.f32.gmra.mrb[0].mxu0 %v321
        %v555 = vpop.f32.mrb[0].mxu0
        %v556 = vadd.f32 0.0, %v555
        %v557 = vpop.f32.mrb[0].mxu0
        %558 = vmatprep.mubr.f32.mxu0 %v325
        %559 = vmatmul.mubr.f32.gmra.mrb[0].mxu0 %v324
        %v560 = vpop.f32.mrb[0].mxu0
        %v561 = vadd.f32 0.0, %v560
        %v562 = vpop.f32.mrb[0].mxu0
        %563 = vmatprep.mubr.f32.mxu0 %v328
        %564 = vmatmul.mubr.f32.gmra.mrb[0].mxu0 %v327
        %v565 = vpop.f32.mrb[0].mxu0
        %v566 = vadd.f32 0.0, %v565
        %v567 = vpop.f32.mrb[0].mxu0
        %568 = vdwg.mxu0
        %569 = vmatprep.subr.mxu0 0.0
        %570 = vmatpush1.msra.mxu0 %v362
        %571 = vmatprep.subr.mxu0 0.0
        %572 = vmatpush1.msra.mxu0 %v363
        %573 = vmatprep.subr.mxu0 0.0
        %574 = vmatpush1.msra.mxu0 %v364
        %575 = vmatprep.subr.mxu0 0.0
        %576 = vmatpush1.msra.mxu0 %v365
        %577 = vmatprep.subr.mxu0 0.0
        %578 = vmatpush1.msra.mxu0 %v366
        %579 = vmatprep.subr.mxu0 0.0
        %580 = vmatpush1.msra.mxu0 %v367
        %581 = vmatprep.subr.mxu0 0.0
        %582 = vmatpush1.msra.mxu0 %v368
        %583 = vmatprep.subr.mxu0 0.0
        %584 = vmatpush1.msra.mxu0 %v369
        %585 = vmatprep.subr.mxu0 0.0
        %586 = vmatpush1.msra.mxu0 %v422
        %587 = vmatprep.subr.mxu0 0.0
        %588 = vmatpush1.msra.mxu0 0.0
        %589 = vmatprep.subr.mxu0 0.0
        %590 = vmatpush1.msra.mxu0 0.0
        %591 = vmatprep.subr.mxu0 0.0
        %592 = vmatpush1.msra.mxu0 0.0
        %593 = vmatprep.subr.mxu0 0.0
        %594 = vmatpush1.msra.mxu0 0.0
        %595 = vmatprep.subr.mxu0 0.0
        %596 = vmatpush1.msra.mxu0 0.0
        %597 = vmatprep.subr.mxu0 0.0
        %598 = vmatpush1.msra.mxu0 0.0
        %599 = vmatprep.subr.mxu0 0.0
        %600 = vmatpush1.msra.mxu0 0.0
        %601 = vmatprep.subr.mxu0 0.0
        %602 = vmatpush1.msra.mxu0 0.0
        %603 = vmatprep.subr.mxu0 0.0
        %604 = vmatpush1.msra.mxu0 0.0
        %605 = vmatprep.subr.mxu0 0.0
        %606 = vmatpush1.msra.mxu0 0.0
        %607 = vmatprep.subr.mxu0 0.0
        %608 = vmatpush1.msra.mxu0 0.0
        %609 = vmatprep.subr.mxu0 0.0
        %610 = vmatpush1.msra.mxu0 0.0
        %611 = vmatprep.subr.mxu0 0.0
        %612 = vmatpush1.msra.mxu0 0.0
        %613 = vmatprep.subr.mxu0 0.0
        %614 = vmatpush1.msra.mxu0 0.0
        %615 = vmatprep.subr.mxu0 0.0
        %616 = vmatpush1.msra.mxu0 0.0
        %617 = vmatprep.subr.mxu0 0.0
        %618 = vmatpush1.msra.mxu0 0.0
        %619 = vmatprep.subr.mxu0 0.0
        %620 = vmatpush1.msra.mxu0 0.0
        %621 = vmatprep.subr.mxu0 0.0
        %622 = vmatpush1.msra.mxu0 0.0
        %623 = vmatprep.subr.mxu0 0.0
        %624 = vmatpush1.msra.mxu0 0.0
        %625 = vmatprep.subr.mxu0 0.0
        %626 = vmatpush1.msra.mxu0 0.0
        %627 = vmatprep.subr.mxu0 0.0
        %628 = vmatpush1.msra.mxu0 0.0
        %629 = vmatprep.subr.mxu0 0.0
        %630 = vmatpush1.msra.mxu0 0.0
        %631 = vmatprep.subr.mxu0 0.0
        %632 = vmatpush1.msra.mxu0 0.0
        %633 = vmatprep.mubr.f32.mxu0 0.0
        %634 = vmatmul.mubr.f32.gmra.mrb[0].mxu0 %v373
        %v635 = vpop.f32.mrb[0].mxu0
        %v636 = vadd.f32 %v491, %v635
        %v637 = vpop.f32.mrb[0].mxu0
        %638 = vmatprep.mubr.f32.mxu0 0.0
        %639 = vmatmul.mubr.f32.gmra.mrb[0].mxu0 %v376
        %v640 = vpop.f32.mrb[0].mxu0
        %v641 = vadd.f32 %v496, %v640
        %v642 = vpop.f32.mrb[0].mxu0
        %643 = vmatprep.mubr.f32.mxu0 0.0
        %644 = vmatmul.mubr.f32.gmra.mrb[0].mxu0 %v379
        %v645 = vpop.f32.mrb[0].mxu0
        %v646 = vadd.f32 %v501, %v645
        %v647 = vpop.f32.mrb[0].mxu0
        %648 = vmatprep.mubr.f32.mxu0 0.0
        %649 = vmatmul.mubr.f32.gmra.mrb[0].mxu0 %v382
        %v650 = vpop.f32.mrb[0].mxu0
        %v651 = vadd.f32 %v506, %v650
        %v652 = vpop.f32.mrb[0].mxu0
        %653 = vmatprep.mubr.f32.mxu0 0.0
        %654 = vmatmul.mubr.f32.gmra.mrb[0].mxu0 %v385
        %v655 = vpop.f32.mrb[0].mxu0
        %v656 = vadd.f32 %v511, %v655
        %v657 = vpop.f32.mrb[0].mxu0
        %658 = vmatprep.mubr.f32.mxu0 0.0
        %659 = vmatmul.mubr.f32.gmra.mrb[0].mxu0 %v388
        %v660 = vpop.f32.mrb[0].mxu0
        %v661 = vadd.f32 %v516, %v660
        %v662 = vpop.f32.mrb[0].mxu0
        %663 = vmatprep.mubr.f32.mxu0 0.0
        %664 = vmatmul.mubr.f32.gmra.mrb[0].mxu0 %v391
        %v665 = vpop.f32.mrb[0].mxu0
        %v666 = vadd.f32 %v521, %v665
        %v667 = vpop.f32.mrb[0].mxu0
        %668 = vmatprep.mubr.f32.mxu0 0.0
        %669 = vmatmul.mubr.f32.gmra.mrb[0].mxu0 %v394
        %v670 = vpop.f32.mrb[0].mxu0
        %v671 = vadd.f32 %v526, %v670
        %v672 = vpop.f32.mrb[0].mxu0
        %673 = vmatprep.mubr.f32.mxu0 0.0
        %674 = vmatmul.mubr.f32.gmra.mrb[0].mxu0 %v397
        %v675 = vpop.f32.mrb[0].mxu0
        %v676 = vadd.f32 %v531, %v675
        %v677 = vpop.f32.mrb[0].mxu0
        %678 = vmatprep.mubr.f32.mxu0 0.0
        %679 = vmatmul.mubr.f32.gmra.mrb[0].mxu0 %v400
        %v680 = vpop.f32.mrb[0].mxu0
        %v681 = vadd.f32 %v536, %v680
        %v682 = vpop.f32.mrb[0].mxu0
        %683 = vmatprep.mubr.f32.mxu0 0.0
        %684 = vmatmul.mubr.f32.gmra.mrb[0].mxu0 %v403
        %v685 = vpop.f32.mrb[0].mxu0
        %v686 = vadd.f32 %v541, %v685
        %v687 = vpop.f32.mrb[0].mxu0
        %688 = vmatprep.mubr.f32.mxu0 0.0
        %689 = vmatmul.mubr.f32.gmra.mrb[0].mxu0 %v406
        %v690 = vpop.f32.mrb[0].mxu0
        %v691 = vadd.f32 %v546, %v690
        %v692 = vpop.f32.mrb[0].mxu0
        %693 = vmatprep.mubr.f32.mxu0 0.0
        %694 = vmatmul.mubr.f32.gmra.mrb[0].mxu0 %v409
        %v695 = vpop.f32.mrb[0].mxu0
        %v696 = vadd.f32 %v551, %v695
        %v697 = vpop.f32.mrb[0].mxu0
        %698 = vmatprep.mubr.f32.mxu0 0.0
        %699 = vmatmul.mubr.f32.gmra.mrb[0].mxu0 %v412
        %v700 = vpop.f32.mrb[0].mxu0
        %v701 = vadd.f32 %v556, %v700
        %v702 = vpop.f32.mrb[0].mxu0
        %703 = vmatprep.mubr.f32.mxu0 0.0
        %704 = vmatmul.mubr.f32.gmra.mrb[0].mxu0 %v415
        %v705 = vpop.f32.mrb[0].mxu0
        %v706 = vadd.f32 %v561, %v705
        %v707 = vpop.f32.mrb[0].mxu0
        %708 = vmatprep.mubr.f32.mxu0 0.0
        %709 = vmatmul.mubr.f32.gmra.mrb[0].mxu0 %v418
        %v710 = vpop.f32.mrb[0].mxu0
        %v711 = vadd.f32 %v566, %v710
        %v712 = vpop.f32.mrb[0].mxu0
        %713 = vdwg.mxu0
        %v714 = vld [vmem:[%s2] sm:$0xff]
        %v715 = vld [vmem:[%s2 + $0x8] sm:$0xff]
        %v716 = vadd.f32 %v636, %v714
        %v717 = vadd.f32 %v641, %v715
        %v718 = vadd.f32 %v646, %v714
        %v719 = vadd.f32 %v651, %v715
        %v720 = vadd.f32 %v656, %v714
        %v721 = vadd.f32 %v661, %v715
        %v722 = vadd.f32 %v666, %v714
        %v723 = vadd.f32 %v671, %v715
        %v724 = vadd.f32 %v676, %v714
        %v725 = vadd.f32 %v681, %v715
        %v726 = vadd.f32 %v686, %v714
        %v727 = vadd.f32 %v691, %v715
        %v728 = vadd.f32 %v696, %v714
        %v729 = vadd.f32 %v701, %v715
        %v730 = vadd.f32 %v706, %v714
        %v731 = vadd.f32 %v711, %v715
        %v732 = vmax.f32 %v716, 0.0
        %v733 = vmax.f32 %v717, 0.0
        %v734 = vmax.f32 %v718, 0.0
        %v735 = vmax.f32 %v719, 0.0
        %v736 = vmax.f32 %v720, 0.0
        %v737 = vmax.f32 %v721, 0.0
        %v738 = vmax.f32 %v722, 0.0
        %v739 = vmax.f32 %v723, 0.0
        %v740 = vmax.f32 %v724, 0.0
        %v741 = vmax.f32 %v725, 0.0
        %v742 = vmax.f32 %v726, 0.0
        %v743 = vmax.f32 %v727, 0.0
        %v744 = vmax.f32 %v728, 0.0
        %v745 = vmax.f32 %v729, 0.0
        %v746 = vmax.f32 %v730, 0.0
        %v747 = vmax.f32 %v731, 0.0
        %v748 = vld [vmem:[%s3] sm:$0xff]
        %v749 = vld [vmem:[%s3 + $0x8] sm:$0xff]
        %v750 = vld [vmem:[%s3 + $0x10] sm:$0xff]
        %v751 = vld [vmem:[%s3 + $0x18] sm:$0xff]
        %v752 = vld [vmem:[%s3 + $0x20] sm:$0xff]
        %v753 = vld [vmem:[%s3 + $0x28] sm:$0xff]
        %v754 = vld [vmem:[%s3 + $0x30] sm:$0xff]
        %v755 = vld [vmem:[%s3 + $0x38] sm:$0xff]
        %v756 = vld [vmem:[%s3 + $0x40] sm:$0xff]
        %v757 = vld [vmem:[%s4] sm:$0x1]
        %v759 = vlaneseq
        %v760 = vshrl.u32 %v759, 7
        %v761 = vsub.s32 0, %v760
        %v762 = vrot.slane %v757, %v761
        %vm764 = vcmask 588800
        %v766 = vsel %vm764, %v732, 0
        %v769 = vsel %vm764, %v733, 0
        %v772 = vsel %vm764, %v734, 0
        %v775 = vsel %vm764, %v735, 0
        %v778 = vsel %vm764, %v736, 0
        %v781 = vsel %vm764, %v737, 0
        %v784 = vsel %vm764, %v738, 0
        %v787 = vsel %vm764, %v739, 0
        %v790 = vsel %vm764, %v740, 0
        %v793 = vsel %vm764, %v741, 0
        %v796 = vsel %vm764, %v742, 0
        %v799 = vsel %vm764, %v743, 0
        %v802 = vsel %vm764, %v744, 0
        %v805 = vsel %vm764, %v745, 0
        %v808 = vsel %vm764, %v746, 0
        %v811 = vsel %vm764, %v747, 0
        %813 = vmatprep.subr.mxu0 0.0
        %814 = vmatpush1.msra.mxu0 %v748
        %815 = vmatprep.subr.mxu0 0.0
        %816 = vmatpush1.msra.mxu0 %v749
        %817 = vmatprep.subr.mxu0 0.0
        %818 = vmatpush1.msra.mxu0 %v750
        %819 = vmatprep.subr.mxu0 0.0
        %820 = vmatpush1.msra.mxu0 %v751
        %821 = vmatprep.subr.mxu0 0.0
        %822 = vmatpush1.msra.mxu0 %v752
        %823 = vmatprep.subr.mxu0 0.0
        %824 = vmatpush1.msra.mxu0 %v753
        %825 = vmatprep.subr.mxu0 0.0
        %826 = vmatpush1.msra.mxu0 %v754
        %827 = vmatprep.subr.mxu0 0.0
        %828 = vmatpush1.msra.mxu0 %v755
        %829 = vmatprep.subr.mxu0 0.0
        %830 = vmatpush1.msra.mxu0 %v756
        %831 = vmatprep.subr.mxu0 0.0
        %832 = vmatpush1.msra.mxu0 0.0
        %833 = vmatprep.subr.mxu0 0.0
        %834 = vmatpush1.msra.mxu0 0.0
        %835 = vmatprep.subr.mxu0 0.0
        %836 = vmatpush1.msra.mxu0 0.0
        %837 = vmatprep.subr.mxu0 0.0
        %838 = vmatpush1.msra.mxu0 0.0
        %839 = vmatprep.subr.mxu0 0.0
        %840 = vmatpush1.msra.mxu0 0.0
        %841 = vmatprep.subr.mxu0 0.0
        %842 = vmatpush1.msra.mxu0 0.0
        %843 = vmatprep.subr.mxu0 0.0
        %844 = vmatpush1.msra.mxu0 0.0
        %845 = vmatprep.subr.mxu0 0.0
        %846 = vmatpush1.msra.mxu0 0.0
        %847 = vmatprep.subr.mxu0 0.0
        %848 = vmatpush1.msra.mxu0 0.0
        %849 = vmatprep.subr.mxu0 0.0
        %850 = vmatpush1.msra.mxu0 0.0
        %851 = vmatprep.subr.mxu0 0.0
        %852 = vmatpush1.msra.mxu0 0.0
        %853 = vmatprep.subr.mxu0 0.0
        %854 = vmatpush1.msra.mxu0 0.0
        %855 = vmatprep.subr.mxu0 0.0
        %856 = vmatpush1.msra.mxu0 0.0
        %857 = vmatprep.subr.mxu0 0.0
        %858 = vmatpush1.msra.mxu0 0.0
        %859 = vmatprep.subr.mxu0 0.0
        %860 = vmatpush1.msra.mxu0 0.0
        %861 = vmatprep.subr.mxu0 0.0
        %862 = vmatpush1.msra.mxu0 0.0
        %863 = vmatprep.subr.mxu0 0.0
        %864 = vmatpush1.msra.mxu0 0.0
        %865 = vmatprep.subr.mxu0 0.0
        %866 = vmatpush1.msra.mxu0 0.0
        %867 = vmatprep.subr.mxu0 0.0
        %868 = vmatpush1.msra.mxu0 0.0
        %869 = vmatprep.subr.mxu0 0.0
        %870 = vmatpush1.msra.mxu0 0.0
        %871 = vmatprep.subr.mxu0 0.0
        %872 = vmatpush1.msra.mxu0 0.0
        %873 = vmatprep.subr.mxu0 0.0
        %874 = vmatpush1.msra.mxu0 0.0
        %875 = vmatprep.subr.mxu0 0.0
        %876 = vmatpush1.msra.mxu0 0.0
        %877 = vmatprep.mubr.f32.mxu0 0.0
        %878 = vmatmul.mubr.f32.gmra.mrb[0].mxu0 %v766
        %v879 = vpop.f32.mrb[0].mxu0
        %v880 = vadd.f32 %v762, %v879
        %v881 = vpop.f32.mrb[0].mxu0
        %882 = vmatprep.mubr.f32.mxu0 0.0
        %883 = vmatmul.mubr.f32.gmra.mrb[0].mxu0 %v769
        %v884 = vpop.f32.mrb[0].mxu0
        %v885 = vadd.f32 %v762, %v884
        %v886 = vpop.f32.mrb[0].mxu0
        %887 = vmatprep.mubr.f32.mxu0 0.0
        %888 = vmatmul.mubr.f32.gmra.mrb[0].mxu0 %v772
        %v889 = vpop.f32.mrb[0].mxu0
        %v890 = vadd.f32 %v762, %v889
        %v891 = vpop.f32.mrb[0].mxu0
        %892 = vmatprep.mubr.f32.mxu0 0.0
        %893 = vmatmul.mubr.f32.gmra.mrb[0].mxu0 %v775
        %v894 = vpop.f32.mrb[0].mxu0
        %v895 = vadd.f32 %v762, %v894
        %v896 = vpop.f32.mrb[0].mxu0
        %897 = vmatprep.mubr.f32.mxu0 0.0
        %898 = vmatmul.mubr.f32.gmra.mrb[0].mxu0 %v778
        %v899 = vpop.f32.mrb[0].mxu0
        %v900 = vadd.f32 %v762, %v899
        %v901 = vpop.f32.mrb[0].mxu0
        %902 = vmatprep.mubr.f32.mxu0 0.0
        %903 = vmatmul.mubr.f32.gmra.mrb[0].mxu0 %v781
        %v904 = vpop.f32.mrb[0].mxu0
        %v905 = vadd.f32 %v762, %v904
        %v906 = vpop.f32.mrb[0].mxu0
        %907 = vmatprep.mubr.f32.mxu0 0.0
        %908 = vmatmul.mubr.f32.gmra.mrb[0].mxu0 %v784
        %v909 = vpop.f32.mrb[0].mxu0
        %v910 = vadd.f32 %v762, %v909
        %v911 = vpop.f32.mrb[0].mxu0
        %912 = vmatprep.mubr.f32.mxu0 0.0
        %913 = vmatmul.mubr.f32.gmra.mrb[0].mxu0 %v787
        %v914 = vpop.f32.mrb[0].mxu0
        %v915 = vadd.f32 %v762, %v914
        %v916 = vpop.f32.mrb[0].mxu0
        %917 = vmatprep.mubr.f32.mxu0 0.0
        %918 = vmatmul.mubr.f32.gmra.mrb[0].mxu0 %v790
        %v919 = vpop.f32.mrb[0].mxu0
        %v920 = vadd.f32 %v762, %v919
        %v921 = vpop.f32.mrb[0].mxu0
        %922 = vmatprep.mubr.f32.mxu0 0.0
        %923 = vmatmul.mubr.f32.gmra.mrb[0].mxu0 %v793
        %v924 = vpop.f32.mrb[0].mxu0
        %v925 = vadd.f32 %v762, %v924
        %v926 = vpop.f32.mrb[0].mxu0
        %927 = vmatprep.mubr.f32.mxu0 0.0
        %928 = vmatmul.mubr.f32.gmra.mrb[0].mxu0 %v796
        %v929 = vpop.f32.mrb[0].mxu0
        %v930 = vadd.f32 %v762, %v929
        %v931 = vpop.f32.mrb[0].mxu0
        %932 = vmatprep.mubr.f32.mxu0 0.0
        %933 = vmatmul.mubr.f32.gmra.mrb[0].mxu0 %v799
        %v934 = vpop.f32.mrb[0].mxu0
        %v935 = vadd.f32 %v762, %v934
        %v936 = vpop.f32.mrb[0].mxu0
        %937 = vmatprep.mubr.f32.mxu0 0.0
        %938 = vmatmul.mubr.f32.gmra.mrb[0].mxu0 %v802
        %v939 = vpop.f32.mrb[0].mxu0
        %v940 = vadd.f32 %v762, %v939
        %v941 = vpop.f32.mrb[0].mxu0
        %942 = vmatprep.mubr.f32.mxu0 0.0
        %943 = vmatmul.mubr.f32.gmra.mrb[0].mxu0 %v805
        %v944 = vpop.f32.mrb[0].mxu0
        %v945 = vadd.f32 %v762, %v944
        %v946 = vpop.f32.mrb[0].mxu0
        %947 = vmatprep.mubr.f32.mxu0 0.0
        %948 = vmatmul.mubr.f32.gmra.mrb[0].mxu0 %v808
        %v949 = vpop.f32.mrb[0].mxu0
        %v950 = vadd.f32 %v762, %v949
        %v951 = vpop.f32.mrb[0].mxu0
        %952 = vmatprep.mubr.f32.mxu0 0.0
        %953 = vmatmul.mubr.f32.gmra.mrb[0].mxu0 %v811
        %v954 = vpop.f32.mrb[0].mxu0
        %v955 = vadd.f32 %v762, %v954
        %v956 = vpop.f32.mrb[0].mxu0
        %957 = vdwg.mxu0
        %v958 = vmax.f32 %v880, 0.0
        %v959 = vmax.f32 %v885, 0.0
        %v960 = vmax.f32 %v890, 0.0
        %v961 = vmax.f32 %v895, 0.0
        %v962 = vmax.f32 %v900, 0.0
        %v963 = vmax.f32 %v905, 0.0
        %v964 = vmax.f32 %v910, 0.0
        %v965 = vmax.f32 %v915, 0.0
        %v966 = vmax.f32 %v920, 0.0
        %v967 = vmax.f32 %v925, 0.0
        %v968 = vmax.f32 %v930, 0.0
        %v969 = vmax.f32 %v935, 0.0
        %v970 = vmax.f32 %v940, 0.0
        %v971 = vmax.f32 %v945, 0.0
        %v972 = vmax.f32 %v950, 0.0
        %v973 = vmax.f32 %v955, 0.0
        %v982 = vrot.slane %v960, 7
        %vm983 = vcmask 1041409
        %v984 = vsel %vm983, %v982, %v958
        %v985 = vrot.slane %v962, 6
        %vm986 = vcmask 1042434
        %v987 = vsel %vm986, %v985, %v984
        %v988 = vrot.slane %v964, 5
        %vm989 = vcmask 1043459
        %v990 = vsel %vm989, %v988, %v987
        %v991 = vrot.slane %v966, 4
        %vm992 = vcmask 1044484
        %v993 = vsel %vm992, %v991, %v990
        %v994 = vrot.slane %v968, 3
        %vm995 = vcmask 1045509
        %v996 = vsel %vm995, %v994, %v993
        %v997 = vrot.slane %v970, 2
        %vm998 = vcmask 1046534
        %v999 = vsel %vm998, %v997, %v996
        %v1000 = vrot.slane %v972, 1
        %vm1001 = vcmask 1047559
        %v1002 = vsel %vm1001, %v1000, %v999
        %vm1004 = vcmask 130048
        %1005 = vst.msk [vmem:[#allocation2] sm:$0xff] %vm1004, %v1002
        %v1006 = vrot.slane %v958, 1
        %v1007 = vsel %vm983, %v960, %v1006
        %v1008 = vrot.slane %v962, 7
        %v1009 = vsel %vm986, %v1008, %v1007
        %v1010 = vrot.slane %v964, 6
        %v1011 = vsel %vm989, %v1010, %v1009
        %v1012 = vrot.slane %v966, 5
        %v1013 = vsel %vm992, %v1012, %v1011
        %v1014 = vrot.slane %v968, 4
        %v1015 = vsel %vm995, %v1014, %v1013
        %v1016 = vrot.slane %v970, 3
        %v1017 = vsel %vm998, %v1016, %v1015
        %v1018 = vrot.slane %v972, 2
        %v1019 = vsel %vm1001, %v1018, %v1017
        %1020 = vrot.lane.b32.xlu0 %v1019, 16
        %v1021 = vpop.permute.xlu0 %1020
        %vm1023 = vcmask 261248
        %1024 = vst.msk [vmem:[#allocation2] sm:$0xff] %vm1023, %v1021
        %v1025 = vrot.slane %v958, 2
        %v1026 = vrot.slane %v960, 1
        %v1027 = vsel %vm983, %v1026, %v1025
        %v1028 = vsel %vm986, %v962, %v1027
        %v1029 = vrot.slane %v964, 7
        %v1030 = vsel %vm989, %v1029, %v1028
        %v1031 = vrot.slane %v966, 6
        %v1032 = vsel %vm992, %v1031, %v1030
        %v1033 = vrot.slane %v968, 5
        %v1034 = vsel %vm995, %v1033, %v1032
        %v1035 = vrot.slane %v970, 4
        %v1036 = vsel %vm998, %v1035, %v1034
        %v1037 = vrot.slane %v972, 3
        %v1038 = vsel %vm1001, %v1037, %v1036
        %1039 = vrot.lane.b32.xlu0 %v1038, 32
        %v1040 = vpop.permute.xlu0 %1039
        %vm1042 = vcmask 392448
        %1043 = vst.msk [vmem:[#allocation2] sm:$0xff] %vm1042, %v1040
        %v1044 = vrot.slane %v958, 3
        %v1045 = vrot.slane %v960, 2
        %v1046 = vsel %vm983, %v1045, %v1044
        %v1047 = vrot.slane %v962, 1
        %v1048 = vsel %vm986, %v1047, %v1046
        %v1049 = vsel %vm989, %v964, %v1048
        %v1050 = vrot.slane %v966, 7
        %v1051 = vsel %vm992, %v1050, %v1049
        %v1052 = vrot.slane %v968, 6
        %v1053 = vsel %vm995, %v1052, %v1051
        %v1054 = vrot.slane %v970, 5
        %v1055 = vsel %vm998, %v1054, %v1053
        %v1056 = vrot.slane %v972, 4
        %v1057 = vsel %vm1001, %v1056, %v1055
        %1058 = vrot.lane.b32.xlu0 %v1057, 48
        %v1059 = vpop.permute.xlu0 %1058
        %vm1061 = vcmask 523648
        %1062 = vst.msk [vmem:[#allocation2] sm:$0xff] %vm1061, %v1059
        %v1063 = vrot.slane %v958, 4
        %v1064 = vrot.slane %v960, 3
        %v1065 = vsel %vm983, %v1064, %v1063
        %v1066 = vrot.slane %v962, 2
        %v1067 = vsel %vm986, %v1066, %v1065
        %v1068 = vrot.slane %v964, 1
        %v1069 = vsel %vm989, %v1068, %v1067
        %v1070 = vsel %vm992, %v966, %v1069
        %v1071 = vrot.slane %v968, 7
        %v1072 = vsel %vm995, %v1071, %v1070
        %v1073 = vrot.slane %v970, 6
        %v1074 = vsel %vm998, %v1073, %v1072
        %v1075 = vrot.slane %v972, 5
        %v1076 = vsel %vm1001, %v1075, %v1074
        %1077 = vrot.lane.b32.xlu0 %v1076, 64
        %v1078 = vpop.permute.xlu0 %1077
        %vm1080 = vcmask 654848
        %1081 = vst.msk [vmem:[#allocation2] sm:$0xff] %vm1080, %v1078
        %v1082 = vrot.slane %v958, 5
        %v1083 = vrot.slane %v960, 4
        %v1084 = vsel %vm983, %v1083, %v1082
        %v1085 = vrot.slane %v962, 3
        %v1086 = vsel %vm986, %v1085, %v1084
        %v1087 = vrot.slane %v964, 2
        %v1088 = vsel %vm989, %v1087, %v1086
        %v1089 = vrot.slane %v966, 1
        %v1090 = vsel %vm992, %v1089, %v1088
        %v1091 = vsel %vm995, %v968, %v1090
        %v1092 = vrot.slane %v970, 7
        %v1093 = vsel %vm998, %v1092, %v1091
        %v1094 = vrot.slane %v972, 6
        %v1095 = vsel %vm1001, %v1094, %v1093
        %1096 = vrot.lane.b32.xlu0 %v1095, 80
        %v1097 = vpop.permute.xlu0 %1096
        %vm1099 = vcmask 786048
        %1100 = vst.msk [vmem:[#allocation2] sm:$0xff] %vm1099, %v1097
        %v1101 = vrot.slane %v958, 6
        %v1102 = vrot.slane %v960, 5
        %v1103 = vsel %vm983, %v1102, %v1101
        %v1104 = vrot.slane %v962, 4
        %v1105 = vsel %vm986, %v1104, %v1103
        %v1106 = vrot.slane %v964, 3
        %v1107 = vsel %vm989, %v1106, %v1105
        %v1108 = vrot.slane %v966, 2
        %v1109 = vsel %vm992, %v1108, %v1107
        %v1110 = vrot.slane %v968, 1
        %v1111 = vsel %vm995, %v1110, %v1109
        %v1112 = vsel %vm998, %v970, %v1111
        %v1113 = vrot.slane %v972, 7
        %v1114 = vsel %vm1001, %v1113, %v1112
        %1115 = vrot.lane.b32.xlu0 %v1114, 96
        %v1116 = vpop.permute.xlu0 %1115
        %vm1118 = vcmask 917248
        %1119 = vst.msk [vmem:[#allocation2] sm:$0xff] %vm1118, %v1116
        %v1120 = vrot.slane %v958, 7
        %v1121 = vrot.slane %v960, 6
        %v1122 = vsel %vm983, %v1121, %v1120
        %v1123 = vrot.slane %v962, 5
        %v1124 = vsel %vm986, %v1123, %v1122
        %v1125 = vrot.slane %v964, 4
        %v1126 = vsel %vm989, %v1125, %v1124
        %v1127 = vrot.slane %v966, 3
        %v1128 = vsel %vm992, %v1127, %v1126
        %v1129 = vrot.slane %v968, 2
        %v1130 = vsel %vm995, %v1129, %v1128
        %v1131 = vrot.slane %v970, 1
        %v1132 = vsel %vm998, %v1131, %v1130
        %v1133 = vsel %vm1001, %v972, %v1132
        %1134 = vrot.lane.b32.xlu0 %v1133, 112
        %v1135 = vpop.permute.xlu0 %1134
        %vm1137 = vcmask 1048448
        %1138 = vst.msk [vmem:[#allocation2] sm:$0xff] %vm1137, %v1135
        %v1147 = vrot.slane %v961, 7
        %v1148 = vsel %vm983, %v1147, %v959
        %v1149 = vrot.slane %v963, 6
        %v1150 = vsel %vm986, %v1149, %v1148
        %v1151 = vrot.slane %v965, 5
        %v1152 = vsel %vm989, %v1151, %v1150
        %v1153 = vrot.slane %v967, 4
        %v1154 = vsel %vm992, %v1153, %v1152
        %v1155 = vrot.slane %v969, 3
        %v1156 = vsel %vm995, %v1155, %v1154
        %v1157 = vrot.slane %v971, 2
        %v1158 = vsel %vm998, %v1157, %v1156
        %v1159 = vrot.slane %v973, 1
        %v1160 = vsel %vm1001, %v1159, %v1158
        %1162 = vst.msk [vmem:[#allocation2 + $0x8] sm:$0xff] %vm1004, %v1160
        %v1163 = vrot.slane %v959, 1
        %v1164 = vsel %vm983, %v961, %v1163
        %v1165 = vrot.slane %v963, 7
        %v1166 = vsel %vm986, %v1165, %v1164
        %v1167 = vrot.slane %v965, 6
        %v1168 = vsel %vm989, %v1167, %v1166
        %v1169 = vrot.slane %v967, 5
        %v1170 = vsel %vm992, %v1169, %v1168
        %v1171 = vrot.slane %v969, 4
        %v1172 = vsel %vm995, %v1171, %v1170
        %v1173 = vrot.slane %v971, 3
        %v1174 = vsel %vm998, %v1173, %v1172
        %v1175 = vrot.slane %v973, 2
        %v1176 = vsel %vm1001, %v1175, %v1174
        %1177 = vrot.lane.b32.xlu0 %v1176, 16
        %v1178 = vpop.permute.xlu0 %1177
        %1180 = vst.msk [vmem:[#allocation2 + $0x8] sm:$0xff] %vm1023, %v1178
        %v1181 = vrot.slane %v959, 2
        %v1182 = vrot.slane %v961, 1
        %v1183 = vsel %vm983, %v1182, %v1181
        %v1184 = vsel %vm986, %v963, %v1183
        %v1185 = vrot.slane %v965, 7
        %v1186 = vsel %vm989, %v1185, %v1184
        %v1187 = vrot.slane %v967, 6
        %v1188 = vsel %vm992, %v1187, %v1186
        %v1189 = vrot.slane %v969, 5
        %v1190 = vsel %vm995, %v1189, %v1188
        %v1191 = vrot.slane %v971, 4
        %v1192 = vsel %vm998, %v1191, %v1190
        %v1193 = vrot.slane %v973, 3
        %v1194 = vsel %vm1001, %v1193, %v1192
        %1195 = vrot.lane.b32.xlu0 %v1194, 32
        %v1196 = vpop.permute.xlu0 %1195
        %1198 = vst.msk [vmem:[#allocation2 + $0x8] sm:$0xff] %vm1042, %v1196
        %v1199 = vrot.slane %v959, 3
        %v1200 = vrot.slane %v961, 2
        %v1201 = vsel %vm983, %v1200, %v1199
        %v1202 = vrot.slane %v963, 1
        %v1203 = vsel %vm986, %v1202, %v1201
        %v1204 = vsel %vm989, %v965, %v1203
        %v1205 = vrot.slane %v967, 7
        %v1206 = vsel %vm992, %v1205, %v1204
        %v1207 = vrot.slane %v969, 6
        %v1208 = vsel %vm995, %v1207, %v1206
        %v1209 = vrot.slane %v971, 5
        %v1210 = vsel %vm998, %v1209, %v1208
        %v1211 = vrot.slane %v973, 4
        %v1212 = vsel %vm1001, %v1211, %v1210
        %1213 = vrot.lane.b32.xlu0 %v1212, 48
        %v1214 = vpop.permute.xlu0 %1213
        %1216 = vst.msk [vmem:[#allocation2 + $0x8] sm:$0xff] %vm1061, %v1214
        %v1217 = vrot.slane %v959, 4
        %v1218 = vrot.slane %v961, 3
        %v1219 = vsel %vm983, %v1218, %v1217
        %v1220 = vrot.slane %v963, 2
        %v1221 = vsel %vm986, %v1220, %v1219
        %v1222 = vrot.slane %v965, 1
        %v1223 = vsel %vm989, %v1222, %v1221
        %v1224 = vsel %vm992, %v967, %v1223
        %v1225 = vrot.slane %v969, 7
        %v1226 = vsel %vm995, %v1225, %v1224
        %v1227 = vrot.slane %v971, 6
        %v1228 = vsel %vm998, %v1227, %v1226
        %v1229 = vrot.slane %v973, 5
        %v1230 = vsel %vm1001, %v1229, %v1228
        %1231 = vrot.lane.b32.xlu0 %v1230, 64
        %v1232 = vpop.permute.xlu0 %1231
        %1234 = vst.msk [vmem:[#allocation2 + $0x8] sm:$0xff] %vm1080, %v1232
        %v1235 = vrot.slane %v959, 5
        %v1236 = vrot.slane %v961, 4
        %v1237 = vsel %vm983, %v1236, %v1235
        %v1238 = vrot.slane %v963, 3
        %v1239 = vsel %vm986, %v1238, %v1237
        %v1240 = vrot.slane %v965, 2
        %v1241 = vsel %vm989, %v1240, %v1239
        %v1242 = vrot.slane %v967, 1
        %v1243 = vsel %vm992, %v1242, %v1241
        %v1244 = vsel %vm995, %v969, %v1243
        %v1245 = vrot.slane %v971, 7
        %v1246 = vsel %vm998, %v1245, %v1244
        %v1247 = vrot.slane %v973, 6
        %v1248 = vsel %vm1001, %v1247, %v1246
        %1249 = vrot.lane.b32.xlu0 %v1248, 80
        %v1250 = vpop.permute.xlu0 %1249
        %1252 = vst.msk [vmem:[#allocation2 + $0x8] sm:$0xff] %vm1099, %v1250
        %v1253 = vrot.slane %v959, 6
        %v1254 = vrot.slane %v961, 5
        %v1255 = vsel %vm983, %v1254, %v1253
        %v1256 = vrot.slane %v963, 4
        %v1257 = vsel %vm986, %v1256, %v1255
        %v1258 = vrot.slane %v965, 3
        %v1259 = vsel %vm989, %v1258, %v1257
        %v1260 = vrot.slane %v967, 2
        %v1261 = vsel %vm992, %v1260, %v1259
        %v1262 = vrot.slane %v969, 1
        %v1263 = vsel %vm995, %v1262, %v1261
        %v1264 = vsel %vm998, %v971, %v1263
        %v1265 = vrot.slane %v973, 7
        %v1266 = vsel %vm1001, %v1265, %v1264
        %1267 = vrot.lane.b32.xlu0 %v1266, 96
        %v1268 = vpop.permute.xlu0 %1267
        %1270 = vst.msk [vmem:[#allocation2 + $0x8] sm:$0xff] %vm1118, %v1268
        %v1271 = vrot.slane %v959, 7
        %v1272 = vrot.slane %v961, 6
        %v1273 = vsel %vm983, %v1272, %v1271
        %v1274 = vrot.slane %v963, 5
        %v1275 = vsel %vm986, %v1274, %v1273
        %v1276 = vrot.slane %v965, 4
        %v1277 = vsel %vm989, %v1276, %v1275
        %v1278 = vrot.slane %v967, 3
        %v1279 = vsel %vm992, %v1278, %v1277
        %v1280 = vrot.slane %v969, 2
        %v1281 = vsel %vm995, %v1280, %v1279
        %v1282 = vrot.slane %v971, 1
        %v1283 = vsel %vm998, %v1282, %v1281
        %v1284 = vsel %vm1001, %v973, %v1283
        %1285 = vrot.lane.b32.xlu0 %v1284, 112
        %v1286 = vpop.permute.xlu0 %1285
        %1288 = vst.msk [vmem:[#allocation2 + $0x8] sm:$0xff] %vm1137, %v1286
        %v1289 = vld [vmem:[#allocation2] sm:$0xff]
        %v1290 = vld [vmem:[#allocation2 + $0x8] sm:$0xff]
        %v1291 = vld [vmem:[%s5] sm:$0xff]
        %v1292 = vld [vmem:[%s5 + $0x8] sm:$0xff]
        %v1293 = vld [vmem:[%s5 + $0x10] sm:$0xff]
        %v1294 = vld [vmem:[%s5 + $0x18] sm:$0xff]
        %v1295 = vld [vmem:[%s5 + $0x20] sm:$0xff]
        %v1296 = vld [vmem:[%s5 + $0x28] sm:$0xff]
        %v1297 = vld [vmem:[%s5 + $0x30] sm:$0xff]
        %v1298 = vld [vmem:[%s5 + $0x38] sm:$0xff]
        %v1299 = vld [vmem:[%s5 + $0x40] sm:$0xff]
        %v1300 = vld [vmem:[%s5 + $0x48] sm:$0xff]
        %v1301 = vld [vmem:[%s5 + $0x50] sm:$0xff]
        %v1302 = vld [vmem:[%s5 + $0x58] sm:$0xff]
        %v1303 = vld [vmem:[%s5 + $0x60] sm:$0xff]
        %v1304 = vld [vmem:[%s5 + $0x68] sm:$0xff]
        %v1305 = vld [vmem:[%s5 + $0x70] sm:$0xff]
        %v1306 = vld [vmem:[%s5 + $0x78] sm:$0xff]
        %v1307 = vld [vmem:[%s5 + $0x80] sm:$0xff]
        %v1308 = vld [vmem:[%s5 + $0x88] sm:$0xff]
        %v1309 = vld [vmem:[%s5 + $0x90] sm:$0xff]
        %v1310 = vld [vmem:[%s5 + $0x98] sm:$0xff]
        %v1311 = vld [vmem:[%s5 + $0xa0] sm:$0xff]
        %v1312 = vld [vmem:[%s5 + $0xa8] sm:$0xff]
        %v1313 = vld [vmem:[%s5 + $0xb0] sm:$0xff]
        %v1314 = vld [vmem:[%s5 + $0xb8] sm:$0xff]
        %v1315 = vld [vmem:[%s5 + $0xc0] sm:$0xff]
        %v1316 = vld [vmem:[%s5 + $0xc8] sm:$0xff]
        %v1317 = vld [vmem:[%s5 + $0xd0] sm:$0xff]
        %v1318 = vld [vmem:[%s5 + $0xd8] sm:$0xff]
        %v1319 = vld [vmem:[%s5 + $0xe0] sm:$0xff]
        %v1320 = vld [vmem:[%s5 + $0xe8] sm:$0xff]
        %v1321 = vld [vmem:[%s5 + $0xf0] sm:$0xff]
        %v1322 = vld [vmem:[%s5 + $0xf8] sm:$0xff]
        %v1323 = vld [vmem:[%s6] sm:$0x1]
        %v1325 = vlaneseq
        %v1326 = vshrl.u32 %v1325, 7
        %v1327 = vsub.s32 0, %v1326
        %v1328 = vrot.slane %v1323, %v1327
        %1330 = vmatprep.subr.mxu0 0.0
        %1331 = vmatpush1.msra.mxu0 %v1291
        %1332 = vmatprep.subr.mxu0 0.0
        %1333 = vmatpush1.msra.mxu0 %v1292
        %1334 = vmatprep.subr.mxu0 0.0
        %1335 = vmatpush1.msra.mxu0 %v1293
        %1336 = vmatprep.subr.mxu0 0.0
        %1337 = vmatpush1.msra.mxu0 %v1294
        %1338 = vmatprep.subr.mxu0 0.0
        %1339 = vmatpush1.msra.mxu0 %v1295
        %1340 = vmatprep.subr.mxu0 0.0
        %1341 = vmatpush1.msra.mxu0 %v1296
        %1342 = vmatprep.subr.mxu0 0.0
        %1343 = vmatpush1.msra.mxu0 %v1297
        %1344 = vmatprep.subr.mxu0 0.0
        %1345 = vmatpush1.msra.mxu0 %v1298
        %1346 = vmatprep.subr.mxu0 0.0
        %1347 = vmatpush1.msra.mxu0 %v1299
        %1348 = vmatprep.subr.mxu0 0.0
        %1349 = vmatpush1.msra.mxu0 %v1300
        %1350 = vmatprep.subr.mxu0 0.0
        %1351 = vmatpush1.msra.mxu0 %v1301
        %1352 = vmatprep.subr.mxu0 0.0
        %1353 = vmatpush1.msra.mxu0 %v1302
        %1354 = vmatprep.subr.mxu0 0.0
        %1355 = vmatpush1.msra.mxu0 %v1303
        %1356 = vmatprep.subr.mxu0 0.0
        %1357 = vmatpush1.msra.mxu0 %v1304
        %1358 = vmatprep.subr.mxu0 0.0
        %1359 = vmatpush1.msra.mxu0 %v1305
        %1360 = vmatprep.subr.mxu0 0.0
        %1361 = vmatpush1.msra.mxu0 %v1306
        %1362 = vmatprep.subr.mxu0 0.0
        %1363 = vmatpush1.msra.mxu0 %v1307
        %1364 = vmatprep.subr.mxu0 0.0
        %1365 = vmatpush1.msra.mxu0 %v1308
        %1366 = vmatprep.subr.mxu0 0.0
        %1367 = vmatpush1.msra.mxu0 %v1309
        %1368 = vmatprep.subr.mxu0 0.0
        %1369 = vmatpush1.msra.mxu0 %v1310
        %1370 = vmatprep.subr.mxu0 0.0
        %1371 = vmatpush1.msra.mxu0 %v1311
        %1372 = vmatprep.subr.mxu0 0.0
        %1373 = vmatpush1.msra.mxu0 %v1312
        %1374 = vmatprep.subr.mxu0 0.0
        %1375 = vmatpush1.msra.mxu0 %v1313
        %1376 = vmatprep.subr.mxu0 0.0
        %1377 = vmatpush1.msra.mxu0 %v1314
        %1378 = vmatprep.subr.mxu0 0.0
        %1379 = vmatpush1.msra.mxu0 %v1315
        %1380 = vmatprep.subr.mxu0 0.0
        %1381 = vmatpush1.msra.mxu0 %v1316
        %1382 = vmatprep.subr.mxu0 0.0
        %1383 = vmatpush1.msra.mxu0 %v1317
        %1384 = vmatprep.subr.mxu0 0.0
        %1385 = vmatpush1.msra.mxu0 %v1318
        %1386 = vmatprep.subr.mxu0 0.0
        %1387 = vmatpush1.msra.mxu0 %v1319
        %1388 = vmatprep.subr.mxu0 0.0
        %1389 = vmatpush1.msra.mxu0 %v1320
        %1390 = vmatprep.subr.mxu0 0.0
        %1391 = vmatpush1.msra.mxu0 %v1321
        %1392 = vmatprep.subr.mxu0 0.0
        %1393 = vmatpush1.msra.mxu0 %v1322
        %1394 = vmatprep.mubr.f32.mxu0 %v1290
        %1395 = vmatmul.mubr.f32.gmra.mrb[0].mxu0 %v1289
        %v1396 = vpop.f32.mrb[0].mxu0
        %v1397 = vadd.f32 %v1328, %v1396
        %v1398 = vpop.f32.mrb[0].mxu0
        %1399 = vdwg.mxu0
        %v1400 = vtanh.pop %v1397
        %1401 = vst [vmem:[%s274] sm:$0xff] %v1400
        %s1402 = sand.u32 %s181, 1
        %s1403 = scalar_lea.sflag [#allocation4], %s1402
        %s1404 = sand.u32 %s181, 1
        %s1405 = smul.addr %s1404, 8
        %s1406 = scalar_lea.vmem [#allocation3], %s1405
        // Predicated region
        $region49: #{tpu_custom_call.1} parent=47 // pred_check
          %p1407 = pneg %p191
        $region50: #{tpu_custom_call.1} parent=47 // pred_check_branch
          %1409 = sbr.rel (%p1407) target = $region52
        $region51: #{tpu_custom_call.1} parent=47 // pred_region
          %s1411 = ssub.s32 128, 128
          %1412 = vsyncadd %s1403, %s1411
          %s1413 = smul.addr %s21, 128
          %s1414 = scalar_lea.hbm %s7, %s1413
          %s1416 = sshll.u32 %s1406, 4
          %s1417 = int_to_ptr.vmem [resolvable:$true] %s1416
          %1419 = dma.vmem_to_hbm [thread:$0]  %s1417, 128, %s1414, %s1403
        $region52: #{tpu_custom_call.1} parent=47 // pred_fallthru
          _
      $region48: #{tpu_custom_call.1} parent=5 // pred_fallthru
        _
      %p1420 = scmp.le.s32.totalorder 2, %s16
      // Predicated region
      $region53: #{tpu_custom_call.1} parent=5 // pred_check
        %p1421 = pneg %p1420
      $region54: #{tpu_custom_call.1} parent=5 // pred_check_branch
        %1423 = sbr.rel (%p1421) target = $region56
      $region55: #{tpu_custom_call.1} parent=5 // pred_region
        %s1424 = ssub.s32 %s16, 2
        // Predicated region
        $region57: #{tpu_custom_call.1} parent=55 // pred_check
          %p1425 = pneg %p197
        $region58: #{tpu_custom_call.1} parent=55 // pred_check_branch
          %1427 = sbr.rel (%p1425) target = $region60
        $region59: #{tpu_custom_call.1} parent=55 // pred_region
          %s1428 = sand.u32 %s182, 1
          %s1429 = scalar_lea.sflag [#allocation4], %s1428
          %s1430 = sand.u32 %s182, 1
          %s1431 = smul.addr %s1430, 8
          %s1432 = scalar_lea.vmem [#allocation3], %s1431
          %1433 = dma.done %s1429, 128
        $region60: #{tpu_custom_call.1} parent=55 // pred_fallthru
          _
      $region56: #{tpu_custom_call.1} parent=5 // pred_fallthru
        _
    $region6: #{tpu_custom_call.1} parent=1 // loop_footer
      %s20 = sadd.s32 1, %s16
    $region7: #{tpu_custom_call.1} parent=1 // loop_footer_branch
      %15 = sbr.rel target = $region3
    $region8: #{tpu_custom_call.1} parent=1 // loop_exit
      _
    %1434 = vsyncpa [#allocation4], 1
    %s1435 = scalar_lea.sflag [#allocation4], 1
    %1436 = vsyncpa %s1435, 1

</llo_original>
